<compile_context>
chip_gen: v7x
topology: tpu7x:2x2x1
jax: 0.10.0
libtpu: 0.0.40
codegen_flags: <defaults>
</compile_context>

<pallas_src>
import functools

import jax
import jax.numpy as jnp
from jax import lax
from jax.experimental import pallas as pl
from jax.experimental.pallas import tpu as pltpu


_NEG_FILL = -1000000000.0  # Python float literal (matches torch masked_fill(-1e9))


def _online_softmax_step(q_ref, kt_ref, v_ref, o_ref, m_sc, l_sc, acc_sc, *,
                         bf16_exp, mask=None):
    ki = pl.program_id(2)

    @pl.when(ki == 0)
    def _init():
        m_sc[...] = jnp.full_like(m_sc, -jnp.inf)
        l_sc[...] = jnp.zeros_like(l_sc)
        acc_sc[...] = jnp.zeros_like(acc_sc)

    q = q_ref[0]    # (tq, dk) bf16, pre-scaled by 1/sqrt(d_k) in the wrapper
    kt = kt_ref[0]  # (dk, tk) bf16, K pre-transposed in the wrapper
    v = v_ref[0]    # (tk, dv) bf16

    # Plain (tq,dk)@(dk,tk) MXU matmul, f32 accumulation, no in-kernel transpose.
    s = jnp.dot(q, kt, preferred_element_type=jnp.float32)
    if mask is not None:
        s = jnp.where(mask, _NEG_FILL, s)

    m_prev = m_sc[...]
    m_new = jnp.maximum(m_prev, jnp.max(s, axis=-1, keepdims=True))
    alpha = jnp.exp(m_prev - m_new)

    if bf16_exp:
        # bf16 EUP path (v6e/v7x): p is needed in bf16 for the MXU anyway.
        p16 = jnp.exp((s - m_new).astype(jnp.bfloat16))
        row_sum = jnp.sum(p16.astype(jnp.float32), axis=-1, keepdims=True)
    else:
        # v5e and older: no bf16 EUP -> keep exp and the row sum in f32.
        p32 = jnp.exp(s - m_new)
        row_sum = jnp.sum(p32, axis=-1, keepdims=True)
        p16 = p32.astype(jnp.bfloat16)

    l_sc[...] = alpha * l_sc[...] + row_sum
    acc_sc[...] = alpha * acc_sc[...] + jnp.dot(
        p16, v, preferred_element_type=jnp.float32)
    m_sc[...] = m_new

    # TODO(synk): nn.Dropout on the attention probs is training-mode only;
    # eval-mode forward (no dropout) is implemented here.

    @pl.when(ki == pl.num_programs(2) - 1)
    def _finalize():
        # Exact divide: finalize runs once per (b, qi) tile, precision for free.
        o_ref[0] = (acc_sc[...] / l_sc[...]).astype(o_ref.dtype)


def _attn_kernel_nomask(q_ref, kt_ref, v_ref, o_ref, m_sc, l_sc, acc_sc, *,
                        bf16_exp):
    _online_softmax_step(q_ref, kt_ref, v_ref, o_ref, m_sc, l_sc, acc_sc,
                         bf16_exp=bf16_exp, mask=None)


def _attn_kernel_dense_mask(q_ref, kt_ref, v_ref, mask_ref, o_ref,
                            m_sc, l_sc, acc_sc, *, bf16_exp):
    _online_softmax_step(q_ref, kt_ref, v_ref, o_ref, m_sc, l_sc, acc_sc,
                         bf16_exp=bf16_exp, mask=mask_ref[0] != 0)


def _attn_kernel_keylen(lens_ref, q_ref, kt_ref, v_ref, o_ref,
                        m_sc, l_sc, acc_sc, *, bf16_exp, tk):
    # Key-padding mask built in-kernel from a scalar-prefetched length:
    # O(tk) iota compare instead of a tq*tk int8 HBM stream per step.
    valid = lens_ref[pl.program_id(0)]
    col = pl.program_id(2) * tk + lax.broadcasted_iota(jnp.int32, (1, tk), 1)
    mask = col >= valid  # (1, tk), broadcasts over the tq rows
    _online_softmax_step(q_ref, kt_ref, v_ref, o_ref, m_sc, l_sc, acc_sc,
                         bf16_exp=bf16_exp, mask=mask)


def _pick_tile(n, candidates):
    for c in candidates:
        if c <= n and n % c == 0:
            return c
    return n  # full extent (always a legal block shape)


def _tpu_generation_ge_v6():
    """True on v6e/v7x (2x256x256 MXU, bf16 EUP); False on v5e and older."""
    try:
        kind = jax.devices()[0].device_kind.lower()
    except Exception:
        return True
    for old in ("v2", "v3", "v4", "v5"):
        if old in kind:
            return False
    return True


def self_attention(q, k, v, att_mask=None, key_lengths=None, *,
                   d_k=None, tq=None, tk=None, bf16_exp=None):
    """Pallas equivalent of SelfAttention.forward (eval mode).

    q: [bz, len_q, d_k], k: [bz, len_k, d_k], v: [bz, len_k, d_v]
    att_mask: optional dense [bz, len_q, len_k] bool/int (True/nonzero == masked)
    key_lengths: optional [bz] int — key-padding fast path (positions >= length
                 are masked); used instead of att_mask when provided.
    returns: [bz, len_q, d_v]
    """
    bz, len_q, dk = q.shape
    _, len_k, _ = k.shape
    _, _, dv = v.shape
    if d_k is None:
        d_k = dk
    scale = 1.0 / float(d_k) ** 0.5
    out_dtype = q.dtype

    new_gen = _tpu_generation_ge_v6()
    if bf16_exp is None:
        bf16_exp = new_gen

    # Scale folded into the wrapper cast: XLA fuses the mul into the cast, the
    # kernel never rescales q per k step, and q is rounded to bf16 only once.
    qb = (q.astype(jnp.float32) * scale).astype(jnp.bfloat16)
    # Pre-transpose K once in HBM -> kernel does (tq,dk)@(dk,tk), no XLU work.
    ktb = jnp.swapaxes(k, -1, -2).astype(jnp.bfloat16)  # [bz, dk, len_k]
    vb = v.astype(jnp.bfloat16)

    # Generation-aware tile defaults: fill the 256x256 MXU M-dim on v6e/v7x,
    # native 128 fit and smaller score working set on v5e.
    if tq is None:
        tq = _pick_tile(len_q, (256, 128) if new_gen else (128, 256))
    if tk is None:
        tk = _pick_tile(len_k, (1024, 512, 256, 128) if new_gen
                        else (512, 256, 128))
    # TODO(synk): pad len_q/len_k to multiples of 128 (masking the pad) instead
    # of relying on the full-extent fallback for ragged lengths.
    assert len_q % tq == 0 and len_k % tk == 0
    grid = (bz, len_q // tq, len_k // tk)

    # Explicit VMEM budget (double-buffered inputs/outputs + scratch + score
    # working set), capped below v7x's 64 MiB physical per-TC VMEM.
    out_isz = jnp.dtype(out_dtype).itemsize
    mask_tile_bytes = tq * tk if (att_mask is not None and key_lengths is None) else 0
    vmem_needed = (
        2 * (tq * dk * 2 + tk * dk * 2 + tk * dv * 2 + mask_tile_bytes
             + tq * dv * out_isz)
        + tq * dv * 4 + 2 * tq * 128 * 4   # acc / m / l scratch (lane-padded)
        + 3 * tq * tk * 4                  # scores / probs working set
    )
    vmem_limit = int(min(max(2 * vmem_needed, 32 * 1024 * 1024),
                         56 * 1024 * 1024))
    compiler_params = pltpu.CompilerParams(
        dimension_semantics=("parallel", "parallel", "arbitrary"),
        vmem_limit_bytes=vmem_limit,
    )
    scratch_shapes = [
        pltpu.VMEM((tq, 1), jnp.float32),   # running row max m
        pltpu.VMEM((tq, 1), jnp.float32),   # running row sum l
        pltpu.VMEM((tq, dv), jnp.float32),  # output accumulator
    ]
    out_shape = jax.ShapeDtypeStruct((bz, len_q, dv), out_dtype)
    # NOTE: for best lane/MXU utilization d_v should be a multiple of 128
    # (fold heads into the feature dim for multi-head use).  If a profile on
    # v7x shows exposed k/v DMA, add pipeline_mode=pl.Buffered(3) to the k/v
    # in_specs below.
    out_spec_noprefetch = pl.BlockSpec((1, tq, dv), lambda b, qi, ki: (b, qi, 0))

    if key_lengths is not None:
        # Key-padding fast path: no dense mask is materialized or streamed.
        lens = jnp.asarray(key_lengths, dtype=jnp.int32).reshape(bz)
        kernel = functools.partial(_attn_kernel_keylen, bf16_exp=bf16_exp, tk=tk)
        grid_spec = pltpu.PrefetchScalarGridSpec(
            num_scalar_prefetch=1,
            grid=grid,
            in_specs=[
                pl.BlockSpec((1, tq, dk), lambda b, qi, ki, lens: (b, qi, 0)),
                pl.BlockSpec((1, dk, tk), lambda b, qi, ki, lens: (b, 0, ki)),
                pl.BlockSpec((1, tk, dv), lambda b, qi, ki, lens: (b, ki, 0)),
            ],
            out_specs=pl.BlockSpec((1, tq, dv),
                                   lambda b, qi, ki, lens: (b, qi, 0)),
            scratch_shapes=scratch_shapes,
        )
        return pl.pallas_call(
            kernel, out_shape=out_shape, grid_spec=grid_spec,
            compiler_params=compiler_params)(lens, qb, ktb, vb)

    if att_mask is not None:
        mask8 = att_mask.astype(jnp.int8)  # 4x less HBM/VMEM than int32
        kernel = functools.partial(_attn_kernel_dense_mask, bf16_exp=bf16_exp)
        grid_spec = pltpu.PrefetchScalarGridSpec(
            num_scalar_prefetch=0,
            grid=grid,
            in_specs=[
                pl.BlockSpec((1, tq, dk), lambda b, qi, ki: (b, qi, 0)),
                pl.BlockSpec((1, dk, tk), lambda b, qi, ki: (b, 0, ki)),
                pl.BlockSpec((1, tk, dv), lambda b, qi, ki: (b, ki, 0)),
                pl.BlockSpec((1, tq, tk), lambda b, qi, ki: (b, qi, ki)),
            ],
            out_specs=out_spec_noprefetch,
            scratch_shapes=scratch_shapes,
        )
        return pl.pallas_call(
            kernel, out_shape=out_shape, grid_spec=grid_spec,
            compiler_params=compiler_params)(qb, ktb, vb, mask8)

    kernel = functools.partial(_attn_kernel_nomask, bf16_exp=bf16_exp)
    grid_spec = pltpu.PrefetchScalarGridSpec(
        num_scalar_prefetch=0,
        grid=grid,
        in_specs=[
            pl.BlockSpec((1, tq, dk), lambda b, qi, ki: (b, qi, 0)),
            pl.BlockSpec((1, dk, tk), lambda b, qi, ki: (b, 0, ki)),
            pl.BlockSpec((1, tk, dv), lambda b, qi, ki: (b, ki, 0)),
        ],
        out_specs=out_spec_noprefetch,
        scratch_shapes=scratch_shapes,
    )
    return pl.pallas_call(
        kernel, out_shape=out_shape, grid_spec=grid_spec,
        compiler_params=compiler_params)(qb, ktb, vb)


def _reference(q, k, v, att_mask, scale):
    s = jnp.einsum("bqd,bkd->bqk", q, k) * scale
    if att_mask is not None:
        s = jnp.where(att_mask, -1000000000.0, s)
    p = jax.nn.softmax(s, axis=-1)
    return jnp.einsum("bqk,bkd->bqd", p, v)


if __name__ == "__main__":
    key = jax.random.PRNGKey(0)
    # Lane-dense d (multiple of 128) and a seq length that exercises the
    # (bz, q_tile, k_tile) tiling and the online-softmax carry.
    bz, len_q, len_k, d_k, d_v = 2, 256, 256, 128, 128

    kq, kk, kv, km = jax.random.split(key, 4)
    q = jax.random.normal(kq, (bz, len_q, d_k), dtype=jnp.float32)
    k = jax.random.normal(kk, (bz, len_k, d_k), dtype=jnp.float32)
    v = jax.random.normal(kv, (bz, len_k, d_v), dtype=jnp.float32)
    # True == masked (same convention as torch masked_fill)
    att_mask = jax.random.bernoulli(km, p=0.2, shape=(bz, len_q, len_k))

    scale = 1.0 / d_k ** 0.5

    # Dense-mask path (tq/tk forced to 128 to exercise the multi-step k carry).
    out_masked = jax.block_until_ready(
        self_attention(q, k, v, att_mask, d_k=d_k, tq=128, tk=128))
    # No-mask path with generation-aware default tiles.
    out_nomask = jax.block_until_ready(self_attention(q, k, v, None, d_k=d_k))
    # Key-padding fast path: per-batch valid lengths instead of a dense mask.
    key_lens = jnp.array([100, 256], dtype=jnp.int32)
    out_klen = jax.block_until_ready(
        self_attention(q, k, v, key_lengths=key_lens, d_k=d_k, tq=128, tk=128))

    ref_masked = _reference(q, k, v, att_mask, scale)
    ref_nomask = _reference(q, k, v, None, scale)
    pad_mask = jnp.broadcast_to(
        jnp.arange(len_k)[None, None, :] >= key_lens[:, None, None],
        (bz, len_q, len_k))
    ref_klen = _reference(q, k, v, pad_mask, scale)

    assert out_masked.shape == (bz, len_q, d_v)
    # bf16 MXU operands (+ bf16 exp on newer gens) => relaxed but meaningful tol.
    assert jnp.allclose(out_masked, ref_masked, atol=5e-2, rtol=5e-2), \
        "masked output mismatch vs reference"
    assert jnp.allclose(out_nomask, ref_nomask, atol=5e-2, rtol=5e-2), \
        "unmasked output mismatch vs reference"
    assert jnp.allclose(out_klen, ref_klen, atol=5e-2, rtol=5e-2), \
        "key-length output mismatch vs reference"

    print("KERNEL_OK")
</pallas_src>

<mosaic_0001>
module attributes {stable_mosaic.version = 11 : i64} {
  func.func @_attn_kernel_dense_mask(%arg0: i32, %arg1: i32, %arg2: i32, %arg3: memref<1x128x128xbf16, #tpu.memory_space<vmem>>, %arg4: memref<1x128x128xbf16, #tpu.memory_space<vmem>>, %arg5: memref<1x128x128xbf16, #tpu.memory_space<vmem>>, %arg6: memref<1x128x128xi8, #tpu.memory_space<vmem>>, %arg7: memref<1x128x128xf32, #tpu.memory_space<vmem>>, %arg8: memref<128x1xf32, #tpu.memory_space<vmem>>, %arg9: memref<128x1xf32, #tpu.memory_space<vmem>>, %arg10: memref<128x128xf32, #tpu.memory_space<vmem>>) attributes {dimension_semantics = [#tpu.dimension_semantics<parallel>, #tpu.dimension_semantics<parallel>, #tpu.dimension_semantics<arbitrary>], iteration_bounds = array<i64: 2, 2, 2>, scalar_prefetch = 0 : i64, scratch_operands = 3 : i64, tpu.core_type = #tpu.core_type<tc>, window_params = [{transform_indices = @transform_0, window_bounds = array<i64: 1, 128, 128>}, {transform_indices = @transform_1, window_bounds = array<i64: 1, 128, 128>}, {transform_indices = @transform_2, window_bounds = array<i64: 1, 128, 128>}, {transform_indices = @transform_3, window_bounds = array<i64: 1, 128, 128>}, {transform_indices = @transform_4, window_bounds = array<i64: 1, 128, 128>}]} {
    %c0 = arith.constant 0 : index
    %c0_0 = arith.constant 0 : index
    %c0_1 = arith.constant 0 : index
    %0 = vector.load %arg6[%c0, %c0_0, %c0_1] : memref<1x128x128xi8, #tpu.memory_space<vmem>>, vector<1x128x128xi8>
    %1 = vector.shape_cast %0 : vector<1x128x128xi8> to vector<128x128xi8>
    %c0_i8 = arith.constant 0 : i8
    %2 = vector.broadcast %c0_i8 : i8 to vector<128x128xi8>
    %3 = arith.cmpi ne, %1, %2 : vector<128x128xi8>
    %c0_i32 = arith.constant 0 : i32
    %4 = arith.cmpi eq, %arg2, %c0_i32 : i32
    %5 = arith.extui %4 : i1 to i32
    %c0_i32_2 = arith.constant 0 : i32
    %6 = arith.cmpi ne, %5, %c0_i32_2 : i32
    scf.if %6 {
      %cst_29 = arith.constant 0xFF800000 : f32
      %43 = vector.broadcast %cst_29 : f32 to vector<128x1xf32>
      %c0_30 = arith.constant 0 : index
      %c0_31 = arith.constant 0 : index
      %44 = vector.load %arg8[%c0_30, %c0_31] : memref<128x1xf32, #tpu.memory_space<vmem>>, vector<128x1xf32>
      tpu.vector_store %arg8[%c0_30, %c0_31], %43 {strides = array<i32>} : memref<128x1xf32, #tpu.memory_space<vmem>>, vector<128x1xf32>,
      %cst_32 = arith.constant 0.000000e+00 : f32
      %45 = vector.broadcast %cst_32 : f32 to vector<128x1xf32>
      %c0_33 = arith.constant 0 : index
      %c0_34 = arith.constant 0 : index
      %46 = vector.load %arg9[%c0_33, %c0_34] : memref<128x1xf32, #tpu.memory_space<vmem>>, vector<128x1xf32>
      tpu.vector_store %arg9[%c0_33, %c0_34], %45 {strides = array<i32>} : memref<128x1xf32, #tpu.memory_space<vmem>>, vector<128x1xf32>,
      %cst_35 = arith.constant 0.000000e+00 : f32
      %47 = vector.broadcast %cst_35 : f32 to vector<128x128xf32>
      %c0_36 = arith.constant 0 : index
      %c0_37 = arith.constant 0 : index
      %48 = vector.load %arg10[%c0_36, %c0_37] : memref<128x128xf32, #tpu.memory_space<vmem>>, vector<128x128xf32>
      tpu.vector_store %arg10[%c0_36, %c0_37], %47 {strides = array<i32>} : memref<128x128xf32, #tpu.memory_space<vmem>>, vector<128x128xf32>,
    } else {
    }
    %c0_3 = arith.constant 0 : index
    %c0_4 = arith.constant 0 : index
    %c0_5 = arith.constant 0 : index
    %7 = vector.load %arg3[%c0_3, %c0_4, %c0_5] : memref<1x128x128xbf16, #tpu.memory_space<vmem>>, vector<1x128x128xbf16>
    %8 = vector.shape_cast %7 : vector<1x128x128xbf16> to vector<128x128xbf16>
    %c0_6 = arith.constant 0 : index
    %c0_7 = arith.constant 0 : index
    %c0_8 = arith.constant 0 : index
    %9 = vector.load %arg4[%c0_6, %c0_7, %c0_8] : memref<1x128x128xbf16, #tpu.memory_space<vmem>>, vector<1x128x128xbf16>
    %10 = vector.shape_cast %9 : vector<1x128x128xbf16> to vector<128x128xbf16>
    %c0_9 = arith.constant 0 : index
    %c0_10 = arith.constant 0 : index
    %c0_11 = arith.constant 0 : index
    %11 = vector.load %arg5[%c0_9, %c0_10, %c0_11] : memref<1x128x128xbf16, #tpu.memory_space<vmem>>, vector<1x128x128xbf16>
    %12 = vector.shape_cast %11 : vector<1x128x128xbf16> to vector<128x128xbf16>
    %cst = arith.constant dense<0.000000e+00> : vector<128x128xf32>
    %13 = tpu.matmul %8, %10, %cst {dimension_numbers = #tpu.dot_dimension_numbers<[1], [0], [0], [1], [0, 0, 1, 1], [], []>} : vector<128x128xbf16>, vector<128x128xbf16>, vector<128x128xf32> -> vector<128x128xf32>
    %cst_12 = arith.constant -1.000000e+09 : f32
    %14 = vector.broadcast %cst_12 : f32 to vector<128x128xf32>
    %15 = arith.select %3, %14, %13 : vector<128x128xi1>, vector<128x128xf32>
    %c0_13 = arith.constant 0 : index
    %c0_14 = arith.constant 0 : index
    %16 = vector.load %arg8[%c0_13, %c0_14] : memref<128x1xf32, #tpu.memory_space<vmem>>, vector<128x1xf32>
    %cst_15 = arith.constant dense<0xFF800000> : vector<128xf32>
    %17 = vector.multi_reduction <maximumf>, %15, %cst_15 [1] : vector<128x128xf32> to vector<128xf32>
    %18 = vector.shape_cast %17 : vector<128xf32> to vector<128x1xf32>
    %19 = arith.maximumf %16, %18 : vector<128x1xf32>
    %20 = arith.subf %16, %19 : vector<128x1xf32>
    %21 = math.exp %20 : vector<128x1xf32>
    %22 = vector.broadcast %19 : vector<128x1xf32> to vector<128x128xf32>
    %23 = arith.subf %15, %22 : vector<128x128xf32>
    %24 = arith.truncf %23 : vector<128x128xf32> to vector<128x128xbf16>
    %25 = math.exp %24 : vector<128x128xbf16>
    %26 = arith.extf %25 : vector<128x128xbf16> to vector<128x128xf32>
    %cst_16 = arith.constant dense<0.000000e+00> : vector<128xf32>
    %27 = vector.multi_reduction <add>, %26, %cst_16 [1] : vector<128x128xf32> to vector<128xf32>
    %28 = vector.shape_cast %27 : vector<128xf32> to vector<128x1xf32>
    %c0_17 = arith.constant 0 : index
    %c0_18 = arith.constant 0 : index
    %29 = vector.load %arg9[%c0_17, %c0_18] : memref<128x1xf32, #tpu.memory_space<vmem>>, vector<128x1xf32>
    %30 = arith.mulf %21, %29 : vector<128x1xf32>
    %31 = arith.addf %30, %28 : vector<128x1xf32>
    %c0_19 = arith.constant 0 : index
    %c0_20 = arith.constant 0 : index
    %32 = vector.load %arg9[%c0_19, %c0_20] : memref<128x1xf32, #tpu.memory_space<vmem>>, vector<128x1xf32>
    tpu.vector_store %arg9[%c0_19, %c0_20], %31 {strides = array<i32>} : memref<128x1xf32, #tpu.memory_space<vmem>>, vector<128x1xf32>,
    %c0_21 = arith.constant 0 : index
    %c0_22 = arith.constant 0 : index
    %33 = vector.load %arg10[%c0_21, %c0_22] : memref<128x128xf32, #tpu.memory_space<vmem>>, vector<128x128xf32>
    %34 = vector.broadcast %21 : vector<128x1xf32> to vector<128x128xf32>
    %35 = arith.mulf %34, %33 : vector<128x128xf32>
    %cst_23 = arith.constant dense<0.000000e+00> : vector<128x128xf32>
    %36 = tpu.matmul %25, %12, %cst_23 {dimension_numbers = #tpu.dot_dimension_numbers<[1], [0], [0], [1], [0, 0, 1, 1], [], []>} : vector<128x128xbf16>, vector<128x128xbf16>, vector<128x128xf32> -> vector<128x128xf32>
    %37 = arith.addf %35, %36 : vector<128x128xf32>
    %c0_24 = arith.constant 0 : index
    %c0_25 = arith.constant 0 : index
    %38 = vector.load %arg10[%c0_24, %c0_25] : memref<128x128xf32, #tpu.memory_space<vmem>>, vector<128x128xf32>
    tpu.vector_store %arg10[%c0_24, %c0_25], %37 {strides = array<i32>} : memref<128x128xf32, #tpu.memory_space<vmem>>, vector<128x128xf32>,
    %c0_26 = arith.constant 0 : index
    %c0_27 = arith.constant 0 : index
    %39 = vector.load %arg8[%c0_26, %c0_27] : memref<128x1xf32, #tpu.memory_space<vmem>>, vector<128x1xf32>
    tpu.vector_store %arg8[%c0_26, %c0_27], %19 {strides = array<i32>} : memref<128x1xf32, #tpu.memory_space<vmem>>, vector<128x1xf32>,
    %c1_i32 = arith.constant 1 : i32
    %40 = arith.cmpi eq, %arg2, %c1_i32 : i32
    %41 = arith.extui %40 : i1 to i32
    %c0_i32_28 = arith.constant 0 : i32
    %42 = arith.cmpi ne, %41, %c0_i32_28 : i32
    scf.if %42 {
      %c0_29 = arith.constant 0 : index
      %c0_30 = arith.constant 0 : index
      %43 = vector.load %arg10[%c0_29, %c0_30] : memref<128x128xf32, #tpu.memory_space<vmem>>, vector<128x128xf32>
      %c0_31 = arith.constant 0 : index
      %c0_32 = arith.constant 0 : index
      %44 = vector.load %arg9[%c0_31, %c0_32] : memref<128x1xf32, #tpu.memory_space<vmem>>, vector<128x1xf32>
      %45 = vector.broadcast %44 : vector<128x1xf32> to vector<128x128xf32>
      %46 = arith.divf %43, %45 : vector<128x128xf32>
      %c0_33 = arith.constant 0 : index
      %c0_34 = arith.constant 0 : index
      %c0_35 = arith.constant 0 : index
      %47 = vector.load %arg7[%c0_33, %c0_34, %c0_35] : memref<1x128x128xf32, #tpu.memory_space<vmem>>, vector<1x128x128xf32>
      %48 = vector.shape_cast %47 : vector<1x128x128xf32> to vector<128x128xf32>
      %49 = vector.shape_cast %46 : vector<128x128xf32> to vector<1x128x128xf32>
      tpu.vector_store %arg7[%c0_33, %c0_34, %c0_35], %49 {strides = array<i32>} : memref<1x128x128xf32, #tpu.memory_space<vmem>>, vector<1x128x128xf32>,
    } else {
    }
    return
  }
  func.func @transform_0(%arg0: i32, %arg1: i32, %arg2: i32) -> (i32, i32, i32) {
    %c0_i32 = arith.constant 0 : i32
    %c0_i32_0 = arith.constant 0 : i32
    return %arg0, %arg1, %c0_i32 : i32, i32, i32
  }
  func.func @transform_1(%arg0: i32, %arg1: i32, %arg2: i32) -> (i32, i32, i32) {
    %c0_i32 = arith.constant 0 : i32
    %c0_i32_0 = arith.constant 0 : i32
    return %arg0, %c0_i32, %arg2 : i32, i32, i32
  }
  func.func @transform_2(%arg0: i32, %arg1: i32, %arg2: i32) -> (i32, i32, i32) {
    %c0_i32 = arith.constant 0 : i32
    %c0_i32_0 = arith.constant 0 : i32
    return %arg0, %arg2, %c0_i32 : i32, i32, i32
  }
  func.func @transform_3(%arg0: i32, %arg1: i32, %arg2: i32) -> (i32, i32, i32) {
    %c0_i32 = arith.constant 0 : i32
    return %arg0, %arg1, %arg2 : i32, i32, i32
  }
  func.func @transform_4(%arg0: i32, %arg1: i32, %arg2: i32) -> (i32, i32, i32) {
    %c0_i32 = arith.constant 0 : i32
    %c0_i32_0 = arith.constant 0 : i32
    return %arg0, %arg1, %c0_i32 : i32, i32, i32
  }
}

</mosaic_0001>

<llo_original>
// kernel: tpu_custom_call.1
$region0: #{tpu_custom_call.1}
  #allocation0 [shape = 'u32[]', space=smem, size = 0x4, offset = 0x4, fixed_abs, tag = 'smem constant byte address 0x4 - core index']
  #allocation1 [shape = 'u32[144,128]{1,0:T(1,128)}', space=vmem, size = 0x12000, scoped, tag = 'internal scratch']
  #allocation2 [shape = 'f32[128,1]{1,0:T(8,128)}', space=vmem, size = 0x10000, scoped, tag = 'scratch operand']
  #allocation3 [shape = 'f32[128,1]{1,0:T(8,128)}', space=vmem, size = 0x10000, scoped, tag = 'scratch operand']
  #allocation4 [shape = 'f32[128,128]{1,0:T(8,128)}', space=vmem, size = 0x10000, scoped, tag = 'scratch operand']
  %s0 = inlined_call_operand.hbm [shape: bf16[2,256,128], index: 0, kind: input, shape index: {}]
  %s1 = inlined_call_operand.hbm [shape: bf16[2,128,256], index: 1, kind: input, shape index: {}]
  %s2 = inlined_call_operand.hbm [shape: bf16[2,256,128], index: 2, kind: input, shape index: {}]
  %s3 = inlined_call_operand.hbm [shape: s8[2,256,256], index: 3, kind: input, shape index: {}]
  %s4 = inlined_call_operand.hbm [shape: f32[2,256,128], index: 4, kind: output, shape index: {}]
  %s5 = sld [smem:[#allocation0]]
  $region73: #{tpu_custom_call.1} parent=0
    _
  %s7 = ssub.s32 1, %s5
  %s8 = scalar_select 0, %s7, %s5
  $region1: #{tpu_custom_call.1} parent=0
    #allocation5 [shape = 'u8[65536]{0}', space=vmem, size = 0x10000, scoped, tag = 'input window, operand 0']
    #allocation6 [shape = 's32[2]{0}', space=sflag, size = 0x8, scoped, tag = 'scoped memory for tpu_custom_call.1']
    #allocation7 [shape = 's32[2]{0}', space=sflag, size = 0x8, scoped, tag = 'scoped memory for tpu_custom_call.1']
    #allocation8 [shape = 'u8[65536]{0}', space=vmem, size = 0x10000, scoped, tag = 'input window, operand 1']
    #allocation9 [shape = 's32[2]{0}', space=sflag, size = 0x8, scoped, tag = 'scoped memory for tpu_custom_call.1']
    #allocation10 [shape = 'u8[65536]{0}', space=vmem, size = 0x10000, scoped, tag = 'input window, operand 2']
    #allocation11 [shape = 'u8[32768]{0}', space=vmem, size = 0x8000, scoped, tag = 'input window, operand 3']
    #allocation12 [shape = 's32[2]{0}', space=sflag, size = 0x8, scoped, tag = 'scoped memory for tpu_custom_call.1']
    #allocation13 [shape = 'u8[131072]{0}', space=vmem, size = 0x20000, scoped, tag = 'output window, operand 0']
    %9 = vsyncpa [#allocation6], 0
    %s10 = scalar_lea.sflag [#allocation6], 1
    %11 = vsyncpa %s10, 0
    %12 = vsyncpa [#allocation9], 0
    %s13 = scalar_lea.sflag [#allocation9], 1
    %14 = vsyncpa %s13, 0
    %15 = vsyncpa [#allocation12], 0
    %s16 = scalar_lea.sflag [#allocation12], 1
    %17 = vsyncpa %s16, 0
    %18 = vsyncpa [#allocation7], 0
    %s19 = scalar_lea.sflag [#allocation7], 1
    %20 = vsyncpa %s19, 0
    loop: start=0, step=1, limit=10
    $region2: #{tpu_custom_call.1} parent=1 // loop_pre_header
      _
    $region3: #{tpu_custom_call.1} parent=1 // loop_header
      %s22 = sphi 0, %s26
      %p23 = scmp.ge.s32.totalorder %s22, 10
      %s29 = sphi 0, %s48
      %s30 = sphi 0, %s44
      %s31 = sphi 0, %s40
      %s32 = sphi 0, %s29
      %s33 = sphi 0, %s30
      %s34 = sphi 0, %s31
      %s35 = sphi 0, %s32
      %s36 = sphi 0, %s33
      %s37 = sphi 0, %s34
      %s53 = sphi 0, %s55
      %s56 = sphi 0, %s53
      %s57 = sphi 0, %s56
      %s73 = sphi 0, %s57
      %s81 = sphi 0, %s83
      %s84 = sphi 0, %s81
      %s85 = sphi 0, %s84
      %s101 = sphi 0, %s85
      %s109 = sphi 0, %s111
      %s112 = sphi 0, %s109
      %s113 = sphi 0, %s112
      %s129 = sphi 0, %s113
      %s139 = sphi 0, %s141
      %s142 = sphi 0, %s139
      %s143 = sphi 0, %s142
      %s159 = sphi 0, %s143
      %s167 = sphi 0, %s169
      %s170 = sphi 0, %s167
      %s171 = sphi 0, %s170
      %s187 = sphi 0, %s171
    $region4: #{tpu_custom_call.1} parent=1 // loop_header_branch
      %25 = sbr.rel (%p23) target = $region8
    $region5: #{tpu_custom_call.1} parent=1 // loop_body
      %s27 = ssub.s32 %s22, 1
      %s28 = ssub.s32 %s22, 2
      %s38 = sadd.s32 1, %s31
      %p39 = scmp.ge.s32.totalorder %s38, 2
      %s40 = scalar_select %p39, 0, %s38
      %s41 = sadd.s32 1, %s30
      %s42 = scalar_select %p39, %s41, %s30
      %p43 = scmp.ge.s32.totalorder %s42, 2
      %s44 = scalar_select %p43, 0, %s42
      %s45 = sadd.s32 1, %s29
      %s46 = scalar_select %p43, %s45, %s29
      %p47 = scmp.ge.s32.totalorder %s46, 2
      %s48 = scalar_select %p47, 0, %s46
      %s49 = ssub.s32 %s29, %s48
      %s50 = ssub.s32 %s30, %s44
      %s51 = sor.u32 %s49, %s50
      %p52 = scmp.eq.s32.totalorder %s51, 0
      %s54 = sadd.s32 %s53, 1
      %s55 = scalar_select %p52, %s53, %s54
      %p58 = pneg %p52
      %p59 = scmp.eq.s32.totalorder %s22, 7
      %p60 = por %p58, %p59
      %p61 = scmp.ne.s32.totalorder %s53, %s56
      %p62 = scmp.eq.s32.totalorder %s22, 0
      %p63 = por %p61, %p62
      %p64 = scmp.ne.s32.totalorder %s53, %s56
      %p65 = scmp.eq.s32.totalorder %s27, 7
      %p66 = por %p64, %p65
      %p67 = scmp.ne.s32.totalorder %s56, %s57
      %p68 = scmp.eq.s32.totalorder %s27, 0
      %p69 = por %p67, %p68
      %p70 = scmp.ne.s32.totalorder %s56, %s57
      %p71 = scmp.eq.s32.totalorder %s28, 7
      %p72 = por %p70, %p71
      %p74 = scmp.ne.s32.totalorder %s57, %s73
      %p75 = scmp.eq.s32.totalorder %s28, 0
      %p76 = por %p74, %p75
      %s77 = ssub.s32 %s29, %s48
      %s78 = ssub.s32 %s31, %s40
      %s79 = sor.u32 %s77, %s78
      %p80 = scmp.eq.s32.totalorder %s79, 0
      %s82 = sadd.s32 %s81, 1
      %s83 = scalar_select %p80, %s81, %s82
      %p86 = pneg %p80
      %p87 = scmp.eq.s32.totalorder %s22, 7
      %p88 = por %p86, %p87
      %p89 = scmp.ne.s32.totalorder %s81, %s84
      %p90 = scmp.eq.s32.totalorder %s22, 0
      %p91 = por %p89, %p90
      %p92 = scmp.ne.s32.totalorder %s81, %s84
      %p93 = scmp.eq.s32.totalorder %s27, 7
      %p94 = por %p92, %p93
      %p95 = scmp.ne.s32.totalorder %s84, %s85
      %p96 = scmp.eq.s32.totalorder %s27, 0
      %p97 = por %p95, %p96
      %p98 = scmp.ne.s32.totalorder %s84, %s85
      %p99 = scmp.eq.s32.totalorder %s28, 7
      %p100 = por %p98, %p99
      %p102 = scmp.ne.s32.totalorder %s85, %s101
      %p103 = scmp.eq.s32.totalorder %s28, 0
      %p104 = por %p102, %p103
      %s105 = ssub.s32 %s29, %s48
      %s106 = ssub.s32 %s31, %s40
      %s107 = sor.u32 %s105, %s106
      %p108 = scmp.eq.s32.totalorder %s107, 0
      %s110 = sadd.s32 %s109, 1
      %s111 = scalar_select %p108, %s109, %s110
      %p114 = pneg %p108
      %p115 = scmp.eq.s32.totalorder %s22, 7
      %p116 = por %p114, %p115
      %p117 = scmp.ne.s32.totalorder %s109, %s112
      %p118 = scmp.eq.s32.totalorder %s22, 0
      %p119 = por %p117, %p118
      %p120 = scmp.ne.s32.totalorder %s109, %s112
      %p121 = scmp.eq.s32.totalorder %s27, 7
      %p122 = por %p120, %p121
      %p123 = scmp.ne.s32.totalorder %s112, %s113
      %p124 = scmp.eq.s32.totalorder %s27, 0
      %p125 = por %p123, %p124
      %p126 = scmp.ne.s32.totalorder %s112, %s113
      %p127 = scmp.eq.s32.totalorder %s28, 7
      %p128 = por %p126, %p127
      %p130 = scmp.ne.s32.totalorder %s113, %s129
      %p131 = scmp.eq.s32.totalorder %s28, 0
      %p132 = por %p130, %p131
      %s133 = ssub.s32 %s29, %s48
      %s134 = ssub.s32 %s30, %s44
      %s135 = sor.u32 %s133, %s134
      %s136 = ssub.s32 %s31, %s40
      %s137 = sor.u32 %s135, %s136
      %p138 = scmp.eq.s32.totalorder %s137, 0
      %s140 = sadd.s32 %s139, 1
      %s141 = scalar_select %p138, %s139, %s140
      %p144 = pneg %p138
      %p145 = scmp.eq.s32.totalorder %s22, 7
      %p146 = por %p144, %p145
      %p147 = scmp.ne.s32.totalorder %s139, %s142
      %p148 = scmp.eq.s32.totalorder %s22, 0
      %p149 = por %p147, %p148
      %p150 = scmp.ne.s32.totalorder %s139, %s142
      %p151 = scmp.eq.s32.totalorder %s27, 7
      %p152 = por %p150, %p151
      %p153 = scmp.ne.s32.totalorder %s142, %s143
      %p154 = scmp.eq.s32.totalorder %s27, 0
      %p155 = por %p153, %p154
      %p156 = scmp.ne.s32.totalorder %s142, %s143
      %p157 = scmp.eq.s32.totalorder %s28, 7
      %p158 = por %p156, %p157
      %p160 = scmp.ne.s32.totalorder %s143, %s159
      %p161 = scmp.eq.s32.totalorder %s28, 0
      %p162 = por %p160, %p161
      %s163 = ssub.s32 %s29, %s48
      %s164 = ssub.s32 %s30, %s44
      %s165 = sor.u32 %s163, %s164
      %p166 = scmp.eq.s32.totalorder %s165, 0
      %s168 = sadd.s32 %s167, 1
      %s169 = scalar_select %p166, %s167, %s168
      %p172 = pneg %p166
      %p173 = scmp.eq.s32.totalorder %s22, 7
      %p174 = por %p172, %p173
      %p175 = scmp.ne.s32.totalorder %s167, %s170
      %p176 = scmp.eq.s32.totalorder %s22, 0
      %p177 = por %p175, %p176
      %p178 = scmp.ne.s32.totalorder %s167, %s170
      %p179 = scmp.eq.s32.totalorder %s27, 7
      %p180 = por %p178, %p179
      %p181 = scmp.ne.s32.totalorder %s170, %s171
      %p182 = scmp.eq.s32.totalorder %s27, 0
      %p183 = por %p181, %p182
      %p184 = scmp.ne.s32.totalorder %s170, %s171
      %p185 = scmp.eq.s32.totalorder %s28, 7
      %p186 = por %p184, %p185
      %p188 = scmp.ne.s32.totalorder %s171, %s187
      %p189 = scmp.eq.s32.totalorder %s28, 0
      %p190 = por %p188, %p189
      %p191 = scmp.le.s32.totalorder 1, %s22
      %p192 = scmp.lt.s32.totalorder %s22, 9
      %p193 = pnand %p191, %p192
      %p194 = pneg %p193
      // Predicated region
      $region9: #{tpu_custom_call.1} parent=5 // pred_check
        _
      $region10: #{tpu_custom_call.1} parent=5 // pred_check_branch
        %196 = sbr.rel (%p193) target = $region12
      $region11: #{tpu_custom_call.1} parent=5 // pred_region
        %s197 = ssub.s32 %s22, 1
      $region12: #{tpu_custom_call.1} parent=5 // pred_fallthru
        _
      %p198 = scmp.lt.s32.totalorder %s22, 8
      // Predicated region
      $region13: #{tpu_custom_call.1} parent=5 // pred_check
        %p199 = pneg %p198
      $region14: #{tpu_custom_call.1} parent=5 // pred_check_branch
        %201 = sbr.rel (%p199) target = $region16
      $region15: #{tpu_custom_call.1} parent=5 // pred_region
        // Predicated region
        $region17: #{tpu_custom_call.1} parent=15 // pred_check
          %p202 = pneg %p63
        $region18: #{tpu_custom_call.1} parent=15 // pred_check_branch
          %204 = sbr.rel (%p202) target = $region20
        $region19: #{tpu_custom_call.1} parent=15 // pred_region
          %s205 = sand.u32 %s53, 1
          %s206 = scalar_lea.sflag [#allocation6], %s205
          %s207 = sand.u32 %s53, 1
          %s208 = smul.addr %s207, 64
          %s209 = scalar_lea.vmem [#allocation5], %s208
          %s210 = smul.u32 16, %s30
          %s212 = ssub.s32 1024, 1024
          %213 = vsyncadd %s206, %s212
          %s214 = smul.addr %s29, 32
          %s215 = sadd.s32 %s210, %s214
          %s216 = smul.addr %s215, 64
          %s217 = scalar_lea.hbm %s0, %s216
          %s218 = sshll.u32 %s209, 4
          %s219 = int_to_ptr.vmem [resolvable:$true] %s218
          %224 = dma.hbm_to_vmem [thread:$0]  %s217, 1024, %s219, %s206, 64, 64, 4
        $region20: #{tpu_custom_call.1} parent=15 // pred_fallthru
          _
        // Predicated region
        $region21: #{tpu_custom_call.1} parent=15 // pred_check
          %p225 = pneg %p91
        $region22: #{tpu_custom_call.1} parent=15 // pred_check_branch
          %227 = sbr.rel (%p225) target = $region24
        $region23: #{tpu_custom_call.1} parent=15 // pred_region
          %s228 = sand.u32 %s22, 1
          %s229 = scalar_lea.sflag [#allocation9], %s228
          %s230 = sand.u32 %s81, 1
          %s231 = smul.addr %s230, 64
          %s232 = scalar_lea.vmem [#allocation8], %s231
          %s234 = ssub.s32 1024, 1024
          %235 = vsyncadd %s229, %s234
          %s236 = smul.addr %s29, 32
          %s237 = sadd.s32 %s31, %s236
          %s238 = smul.addr %s237, 64
          %s239 = scalar_lea.hbm %s1, %s238
          %s240 = sshll.u32 %s232, 4
          %s241 = int_to_ptr.vmem [resolvable:$true] %s240
          %246 = dma.hbm_to_vmem [thread:$0]  %s239, 1024, %s241, %s229, 128, 64, 4
        $region24: #{tpu_custom_call.1} parent=15 // pred_fallthru
          _
        // Predicated region
        $region25: #{tpu_custom_call.1} parent=15 // pred_check
          %p247 = pneg %p119
        $region26: #{tpu_custom_call.1} parent=15 // pred_check_branch
          %249 = sbr.rel (%p247) target = $region28
        $region27: #{tpu_custom_call.1} parent=15 // pred_region
          %s250 = sand.u32 %s22, 1
          %s251 = scalar_lea.sflag [#allocation9], %s250
          %s252 = sand.u32 %s109, 1
          %s253 = smul.addr %s252, 64
          %s254 = scalar_lea.vmem [#allocation10], %s253
          %s255 = smul.u32 16, %s31
          %s257 = ssub.s32 1024, 1024
          %258 = vsyncadd %s251, %s257
          %s259 = smul.addr %s29, 32
          %s260 = sadd.s32 %s255, %s259
          %s261 = smul.addr %s260, 64
          %s262 = scalar_lea.hbm %s2, %s261
          %s263 = sshll.u32 %s254, 4
          %s264 = int_to_ptr.vmem [resolvable:$true] %s263
          %269 = dma.hbm_to_vmem [thread:$0]  %s262, 1024, %s264, %s251, 64, 64, 4
        $region28: #{tpu_custom_call.1} parent=15 // pred_fallthru
          _
        // Predicated region
        $region29: #{tpu_custom_call.1} parent=15 // pred_check
          %p270 = pneg %p149
        $region30: #{tpu_custom_call.1} parent=15 // pred_check_branch
          %272 = sbr.rel (%p270) target = $region32
        $region31: #{tpu_custom_call.1} parent=15 // pred_region
          %s273 = sand.u32 %s139, 1
          %s274 = scalar_lea.sflag [#allocation12], %s273
          %s275 = sand.u32 %s139, 1
          %s276 = smul.addr %s275, 32
          %s277 = scalar_lea.vmem [#allocation11], %s276
          %s278 = smul.u32 4, %s30
          %s280 = ssub.s32 512, 512
          %281 = vsyncadd %s274, %s280
          %s282 = smul.addr %s278, 2
          %s283 = sadd.s32 %s31, %s282
          %s284 = smul.addr %s29, 16
          %s285 = sadd.s32 %s283, %s284
          %s286 = smul.addr %s285, 128
          %s287 = scalar_lea.hbm %s3, %s286
          %s288 = sshll.u32 %s277, 4
          %s289 = int_to_ptr.vmem [resolvable:$true] %s288
          %294 = dma.hbm_to_vmem [thread:$0]  %s287, 512, %s289, %s274, 256, 128, 8
        $region32: #{tpu_custom_call.1} parent=15 // pred_fallthru
          _
      $region16: #{tpu_custom_call.1} parent=5 // pred_fallthru
        _
      %p295 = scmp.le.s32.totalorder 1, %s22
      %p296 = scmp.lt.s32.totalorder %s22, 9
      %p297 = pnand %p295, %p296
      %p298 = pneg %p297
      // Predicated region
      $region33: #{tpu_custom_call.1} parent=5 // pred_check
        _
      $region34: #{tpu_custom_call.1} parent=5 // pred_check_branch
        %300 = sbr.rel (%p297) target = $region36
      $region35: #{tpu_custom_call.1} parent=5 // pred_region
        %s301 = ssub.s32 %s22, 1
        %s302 = sand.u32 %s56, 1
        %s303 = scalar_lea.sflag [#allocation6], %s302
        %s304 = sand.u32 %s56, 1
        %s305 = smul.addr %s304, 64
        %s306 = scalar_lea.vmem [#allocation5], %s305
        // Predicated region
        $region37: #{tpu_custom_call.1} parent=35 // pred_check
          %p307 = pneg %p69
        $region38: #{tpu_custom_call.1} parent=35 // pred_check_branch
          %309 = sbr.rel (%p307) target = $region40
        $region39: #{tpu_custom_call.1} parent=35 // pred_region
          %310 = dma.done %s303, 1024
        $region40: #{tpu_custom_call.1} parent=35 // pred_fallthru
          _
        %s311 = sand.u32 %s27, 1
        %s312 = scalar_lea.sflag [#allocation9], %s311
        %s313 = sand.u32 %s84, 1
        %s314 = smul.addr %s313, 64
        %s315 = scalar_lea.vmem [#allocation8], %s314
        // Predicated region
        $region41: #{tpu_custom_call.1} parent=35 // pred_check
          %p316 = pneg %p97
        $region42: #{tpu_custom_call.1} parent=35 // pred_check_branch
          %318 = sbr.rel (%p316) target = $region44
        $region43: #{tpu_custom_call.1} parent=35 // pred_region
          %319 = dma.done %s312, 1024
        $region44: #{tpu_custom_call.1} parent=35 // pred_fallthru
          _
        %s320 = sand.u32 %s27, 1
        %s321 = scalar_lea.sflag [#allocation9], %s320
        %s322 = sand.u32 %s112, 1
        %s323 = smul.addr %s322, 64
        %s324 = scalar_lea.vmem [#allocation10], %s323
        // Predicated region
        $region45: #{tpu_custom_call.1} parent=35 // pred_check
          %p325 = pneg %p125
        $region46: #{tpu_custom_call.1} parent=35 // pred_check_branch
          %327 = sbr.rel (%p325) target = $region48
        $region47: #{tpu_custom_call.1} parent=35 // pred_region
          %328 = dma.done %s321, 1024
        $region48: #{tpu_custom_call.1} parent=35 // pred_fallthru
          _
        %s329 = sand.u32 %s142, 1
        %s330 = scalar_lea.sflag [#allocation12], %s329
        %s331 = sand.u32 %s142, 1
        %s332 = smul.addr %s331, 32
        %s333 = scalar_lea.vmem [#allocation11], %s332
        // Predicated region
        $region49: #{tpu_custom_call.1} parent=35 // pred_check
          %p334 = pneg %p155
        $region50: #{tpu_custom_call.1} parent=35 // pred_check_branch
          %336 = sbr.rel (%p334) target = $region52
        $region51: #{tpu_custom_call.1} parent=35 // pred_region
          %337 = dma.done %s330, 512
        $region52: #{tpu_custom_call.1} parent=35 // pred_fallthru
          _
        %s338 = sand.u32 %s56, 1
        %s339 = scalar_lea.sflag [#allocation6], %s338
        %s340 = sand.u32 %s56, 1
        %s341 = smul.addr %s340, 64
        %s342 = scalar_lea.vmem [#allocation5], %s341
        %p343 = pneg %p69
        %p344 = pneg %p66
        %s345 = sand.u32 %s27, 1
        %s346 = scalar_lea.sflag [#allocation9], %s345
        %s347 = sand.u32 %s84, 1
        %s348 = smul.addr %s347, 64
        %s349 = scalar_lea.vmem [#allocation8], %s348
        %p350 = pneg %p97
        %p351 = pneg %p94
        %s352 = sand.u32 %s27, 1
        %s353 = scalar_lea.sflag [#allocation9], %s352
        %s354 = sand.u32 %s112, 1
        %s355 = smul.addr %s354, 64
        %s356 = scalar_lea.vmem [#allocation10], %s355
        %p357 = pneg %p125
        %p358 = pneg %p122
        %s359 = sand.u32 %s142, 1
        %s360 = scalar_lea.sflag [#allocation12], %s359
        %s361 = sand.u32 %s142, 1
        %s362 = smul.addr %s361, 32
        %s363 = scalar_lea.vmem [#allocation11], %s362
        %p364 = pneg %p155
        %p365 = pneg %p152
        %p366 = pneg %p183
        %p367 = pneg %p180
        %s368 = sand.u32 %s170, 1
        %s369 = scalar_lea.sflag [#allocation7], %s368
        %s370 = sand.u32 %s170, 1
        %s371 = smul.addr %s370, 128
        %s372 = scalar_lea.vmem [#allocation13], %s371
        %s373 = smul.u32 16, %s33
        %s374 = smul.u32 16, %s34
        %s375 = smul.u32 4, %s33
        %s376 = smul.u32 16, %s33
        %v380 = vld [vmem:[%s333] sm:$0xff]
        %v381 = vld [vmem:[%s333 + $0x8] sm:$0xff]
        %v382 = vld [vmem:[%s333 + $0x10] sm:$0xff]
        %v383 = vld [vmem:[%s333 + $0x18] sm:$0xff]
        %vm384 = vnez %v380
        %vm385 = vnez %v381
        %vm386 = vnez %v382
        %vm387 = vnez %v383
        %p388 = scmp.eq.s32.totalorder %s34, 0
        // Predicated region
        $region53: #{tpu_custom_call.1} parent=35 // pred_check
          %p389 = pneg %p388
        $region54: #{tpu_custom_call.1} parent=35 // pred_check_branch
          %391 = sbr.rel (%p389) target = $region56
        $region55: #{tpu_custom_call.1} parent=35 // pred_region
          %vm392 = vcmask 7168
          %393 = vst.msk [vmem:[#allocation2] sm:$0xff] %vm392, -inf
          %394 = vst.msk [vmem:[#allocation2 + $0x8] sm:$0xff] %vm392, -inf
          %395 = vst.msk [vmem:[#allocation2 + $0x10] sm:$0xff] %vm392, -inf
          %396 = vst.msk [vmem:[#allocation2 + $0x18] sm:$0xff] %vm392, -inf
          %397 = vst.msk [vmem:[#allocation2 + $0x20] sm:$0xff] %vm392, -inf
          %398 = vst.msk [vmem:[#allocation2 + $0x28] sm:$0xff] %vm392, -inf
          %399 = vst.msk [vmem:[#allocation2 + $0x30] sm:$0xff] %vm392, -inf
          %400 = vst.msk [vmem:[#allocation2 + $0x38] sm:$0xff] %vm392, -inf
          %401 = vst.msk [vmem:[#allocation2 + $0x40] sm:$0xff] %vm392, -inf
          %402 = vst.msk [vmem:[#allocation2 + $0x48] sm:$0xff] %vm392, -inf
          %403 = vst.msk [vmem:[#allocation2 + $0x50] sm:$0xff] %vm392, -inf
          %404 = vst.msk [vmem:[#allocation2 + $0x58] sm:$0xff] %vm392, -inf
          %405 = vst.msk [vmem:[#allocation2 + $0x60] sm:$0xff] %vm392, -inf
          %406 = vst.msk [vmem:[#allocation2 + $0x68] sm:$0xff] %vm392, -inf
          %407 = vst.msk [vmem:[#allocation2 + $0x70] sm:$0xff] %vm392, -inf
          %408 = vst.msk [vmem:[#allocation2 + $0x78] sm:$0xff] %vm392, -inf
          %409 = vst.msk [vmem:[#allocation3] sm:$0xff] %vm392, 0.0
          %410 = vst.msk [vmem:[#allocation3 + $0x8] sm:$0xff] %vm392, 0.0
          %411 = vst.msk [vmem:[#allocation3 + $0x10] sm:$0xff] %vm392, 0.0
          %412 = vst.msk [vmem:[#allocation3 + $0x18] sm:$0xff] %vm392, 0.0
          %413 = vst.msk [vmem:[#allocation3 + $0x20] sm:$0xff] %vm392, 0.0
          %414 = vst.msk [vmem:[#allocation3 + $0x28] sm:$0xff] %vm392, 0.0
          %415 = vst.msk [vmem:[#allocation3 + $0x30] sm:$0xff] %vm392, 0.0
          %416 = vst.msk [vmem:[#allocation3 + $0x38] sm:$0xff] %vm392, 0.0
          %417 = vst.msk [vmem:[#allocation3 + $0x40] sm:$0xff] %vm392, 0.0
          %418 = vst.msk [vmem:[#allocation3 + $0x48] sm:$0xff] %vm392, 0.0
          %419 = vst.msk [vmem:[#allocation3 + $0x50] sm:$0xff] %vm392, 0.0
          %420 = vst.msk [vmem:[#allocation3 + $0x58] sm:$0xff] %vm392, 0.0
          %421 = vst.msk [vmem:[#allocation3 + $0x60] sm:$0xff] %vm392, 0.0
          %422 = vst.msk [vmem:[#allocation3 + $0x68] sm:$0xff] %vm392, 0.0
          %423 = vst.msk [vmem:[#allocation3 + $0x70] sm:$0xff] %vm392, 0.0
          %424 = vst.msk [vmem:[#allocation3 + $0x78] sm:$0xff] %vm392, 0.0
          %425 = vst [vmem:[#allocation4] sm:$0xff] 0.0
          %426 = vst [vmem:[#allocation4 + $0x8] sm:$0xff] 0.0
          %427 = vst [vmem:[#allocation4 + $0x10] sm:$0xff] 0.0
          %428 = vst [vmem:[#allocation4 + $0x18] sm:$0xff] 0.0
          %429 = vst [vmem:[#allocation4 + $0x20] sm:$0xff] 0.0
          %430 = vst [vmem:[#allocation4 + $0x28] sm:$0xff] 0.0
          %431 = vst [vmem:[#allocation4 + $0x30] sm:$0xff] 0.0
          %432 = vst [vmem:[#allocation4 + $0x38] sm:$0xff] 0.0
          %433 = vst [vmem:[#allocation4 + $0x40] sm:$0xff] 0.0
          %434 = vst [vmem:[#allocation4 + $0x48] sm:$0xff] 0.0
          %435 = vst [vmem:[#allocation4 + $0x50] sm:$0xff] 0.0
          %436 = vst [vmem:[#allocation4 + $0x58] sm:$0xff] 0.0
          %437 = vst [vmem:[#allocation4 + $0x60] sm:$0xff] 0.0
          %438 = vst [vmem:[#allocation4 + $0x68] sm:$0xff] 0.0
          %439 = vst [vmem:[#allocation4 + $0x70] sm:$0xff] 0.0
          %440 = vst [vmem:[#allocation4 + $0x78] sm:$0xff] 0.0
        $region56: #{tpu_custom_call.1} parent=35 // pred_fallthru
          _
        %v441 = vld [vmem:[%s306] sm:$0xf]
        %v442 = vld [vmem:[%s306 + $0x4] sm:$0xf]
        %v443 = vld [vmem:[%s306 + $0x8] sm:$0xf]
        %v444 = vld [vmem:[%s306 + $0xc] sm:$0xf]
        %v445 = vld [vmem:[%s306 + $0x10] sm:$0xf]
        %v446 = vld [vmem:[%s306 + $0x14] sm:$0xf]
        %v447 = vld [vmem:[%s306 + $0x18] sm:$0xf]
        %v448 = vld [vmem:[%s306 + $0x1c] sm:$0xf]
        %v449 = vld [vmem:[%s306 + $0x20] sm:$0xf]
        %v450 = vld [vmem:[%s306 + $0x24] sm:$0xf]
        %v451 = vld [vmem:[%s306 + $0x28] sm:$0xf]
        %v452 = vld [vmem:[%s306 + $0x2c] sm:$0xf]
        %v453 = vld [vmem:[%s306 + $0x30] sm:$0xf]
        %v454 = vld [vmem:[%s306 + $0x34] sm:$0xf]
        %v455 = vld [vmem:[%s306 + $0x38] sm:$0xf]
        %v456 = vld [vmem:[%s306 + $0x3c] sm:$0xf]
        %v457 = vld [vmem:[%s315] sm:$0xf]
        %v458 = vld [vmem:[%s315 + $0x4] sm:$0xf]
        %v459 = vld [vmem:[%s315 + $0x8] sm:$0xf]
        %v460 = vld [vmem:[%s315 + $0xc] sm:$0xf]
        %v461 = vld [vmem:[%s315 + $0x10] sm:$0xf]
        %v462 = vld [vmem:[%s315 + $0x14] sm:$0xf]
        %v463 = vld [vmem:[%s315 + $0x18] sm:$0xf]
        %v464 = vld [vmem:[%s315 + $0x1c] sm:$0xf]
        %v465 = vld [vmem:[%s315 + $0x20] sm:$0xf]
        %v466 = vld [vmem:[%s315 + $0x24] sm:$0xf]
        %v467 = vld [vmem:[%s315 + $0x28] sm:$0xf]
        %v468 = vld [vmem:[%s315 + $0x2c] sm:$0xf]
        %v469 = vld [vmem:[%s315 + $0x30] sm:$0xf]
        %v470 = vld [vmem:[%s315 + $0x34] sm:$0xf]
        %v471 = vld [vmem:[%s315 + $0x38] sm:$0xf]
        %v472 = vld [vmem:[%s315 + $0x3c] sm:$0xf]
        %v473 = vld [vmem:[%s324] sm:$0xf]
        %v474 = vld [vmem:[%s324 + $0x4] sm:$0xf]
        %v475 = vld [vmem:[%s324 + $0x8] sm:$0xf]
        %v476 = vld [vmem:[%s324 + $0xc] sm:$0xf]
        %v477 = vld [vmem:[%s324 + $0x10] sm:$0xf]
        %v478 = vld [vmem:[%s324 + $0x14] sm:$0xf]
        %v479 = vld [vmem:[%s324 + $0x18] sm:$0xf]
        %v480 = vld [vmem:[%s324 + $0x1c] sm:$0xf]
        %v481 = vld [vmem:[%s324 + $0x20] sm:$0xf]
        %v482 = vld [vmem:[%s324 + $0x24] sm:$0xf]
        %v483 = vld [vmem:[%s324 + $0x28] sm:$0xf]
        %v484 = vld [vmem:[%s324 + $0x2c] sm:$0xf]
        %v485 = vld [vmem:[%s324 + $0x30] sm:$0xf]
        %v486 = vld [vmem:[%s324 + $0x34] sm:$0xf]
        %v487 = vld [vmem:[%s324 + $0x38] sm:$0xf]
        %v488 = vld [vmem:[%s324 + $0x3c] sm:$0xf]
        %v505 = vunpack.c.l.b16 %v441
        %v506 = vunpack.c.l.b16 %v442
        %v507 = vunpack.c.l.b16 %v443
        %v508 = vunpack.c.l.b16 %v444
        %v509 = vunpack.c.l.b16 %v445
        %v510 = vunpack.c.l.b16 %v446
        %v511 = vunpack.c.l.b16 %v447
        %v512 = vunpack.c.l.b16 %v448
        %v513 = vunpack.c.l.b16 %v449
        %v514 = vunpack.c.l.b16 %v450
        %v515 = vunpack.c.l.b16 %v451
        %v516 = vunpack.c.l.b16 %v452
        %v517 = vunpack.c.l.b16 %v453
        %v518 = vunpack.c.l.b16 %v454
        %v519 = vunpack.c.l.b16 %v455
        %v520 = vunpack.c.l.b16 %v456
        %v521 = vpack.c.b16 %v506, %v505
        %v522 = vpack.c.b16 %v508, %v507
        %v523 = vpack.c.b16 %v510, %v509
        %v524 = vpack.c.b16 %v512, %v511
        %v525 = vpack.c.b16 %v514, %v513
        %v526 = vpack.c.b16 %v516, %v515
        %v527 = vpack.c.b16 %v518, %v517
        %v528 = vpack.c.b16 %v520, %v519
        %v553 = vunpack.c.l.b16 %v457
        %v554 = vunpack.c.l.b16 %v458
        %v555 = vunpack.c.l.b16 %v459
        %v556 = vunpack.c.l.b16 %v460
        %v557 = vunpack.c.l.b16 %v461
        %v558 = vunpack.c.l.b16 %v462
        %v559 = vunpack.c.l.b16 %v463
        %v560 = vunpack.c.l.b16 %v464
        %v561 = vunpack.c.l.b16 %v465
        %v562 = vunpack.c.l.b16 %v466
        %v563 = vunpack.c.l.b16 %v467
        %v564 = vunpack.c.l.b16 %v468
        %v565 = vunpack.c.l.b16 %v469
        %v566 = vunpack.c.l.b16 %v470
        %v567 = vunpack.c.l.b16 %v471
        %v568 = vunpack.c.l.b16 %v472
        %v569 = vpack.c.b16 %v554, %v553
        %v570 = vpack.c.b16 %v556, %v555
        %v571 = vpack.c.b16 %v558, %v557
        %v572 = vpack.c.b16 %v560, %v559
        %v573 = vpack.c.b16 %v562, %v561
        %v574 = vpack.c.b16 %v564, %v563
        %v575 = vpack.c.b16 %v566, %v565
        %v576 = vpack.c.b16 %v568, %v567
        %585 = vmatprep.subr.bf16.mxu0 0
        %586 = vmatpush1.bf16.msra.mxu0 %v569
        %587 = vmatprep.subr.bf16.mxu0 0
        %588 = vmatpush1.bf16.msra.mxu0 %v570
        %589 = vmatprep.subr.bf16.mxu0 0
        %590 = vmatpush1.bf16.msra.mxu0 %v571
        %591 = vmatprep.subr.bf16.mxu0 0
        %592 = vmatpush1.bf16.msra.mxu0 %v572
        %593 = vmatprep.subr.bf16.mxu0 0
        %594 = vmatpush1.bf16.msra.mxu0 %v573
        %595 = vmatprep.subr.bf16.mxu0 0
        %596 = vmatpush1.bf16.msra.mxu0 %v574
        %597 = vmatprep.subr.bf16.mxu0 0
        %598 = vmatpush1.bf16.msra.mxu0 %v575
        %599 = vmatprep.subr.bf16.mxu0 0
        %600 = vmatpush1.bf16.msra.mxu0 %v576
        %601 = vmatprep.subr.bf16.mxu0 0
        %602 = vmatpush1.bf16.msra.mxu0 0
        %603 = vmatprep.subr.bf16.mxu0 0
        %604 = vmatpush1.bf16.msra.mxu0 0
        %605 = vmatprep.subr.bf16.mxu0 0
        %606 = vmatpush1.bf16.msra.mxu0 0
        %607 = vmatprep.subr.bf16.mxu0 0
        %608 = vmatpush1.bf16.msra.mxu0 0
        %609 = vmatprep.subr.bf16.mxu0 0
        %610 = vmatpush1.bf16.msra.mxu0 0
        %611 = vmatprep.subr.bf16.mxu0 0
        %612 = vmatpush1.bf16.msra.mxu0 0
        %613 = vmatprep.subr.bf16.mxu0 0
        %614 = vmatpush1.bf16.msra.mxu0 0
        %615 = vmatprep.subr.bf16.mxu0 0
        %616 = vmatpush1.bf16.msra.mxu0 0
        %617 = vmatprep.mubr.bf16.mxu0 0
        %618 = vmatmul.mubr.bf16.gmra.mrb[0].mxu0 %v521
        %v619 = vpop.f32.mrb[0].mxu0
        %v620 = vadd.f32 0.0, %v619
        %v621 = vpop.f32.mrb[0].mxu0
        %v622 = vpop.f32.mrb[0].mxu0
        %v623 = vadd.f32 0.0, %v622
        %v624 = vpop.f32.mrb[0].mxu0
        %625 = vmatprep.mubr.bf16.mxu0 0
        %626 = vmatmul.mubr.bf16.gmra.mrb[0].mxu0 %v522
        %v627 = vpop.f32.mrb[0].mxu0
        %v628 = vadd.f32 0.0, %v627
        %v629 = vpop.f32.mrb[0].mxu0
        %v630 = vpop.f32.mrb[0].mxu0
        %v631 = vadd.f32 0.0, %v630
        %v632 = vpop.f32.mrb[0].mxu0
        %633 = vmatprep.mubr.bf16.mxu0 0
        %634 = vmatmul.mubr.bf16.gmra.mrb[0].mxu0 %v523
        %v635 = vpop.f32.mrb[0].mxu0
        %v636 = vadd.f32 0.0, %v635
        %v637 = vpop.f32.mrb[0].mxu0
        %v638 = vpop.f32.mrb[0].mxu0
        %v639 = vadd.f32 0.0, %v638
        %v640 = vpop.f32.mrb[0].mxu0
        %641 = vmatprep.mubr.bf16.mxu0 0
        %642 = vmatmul.mubr.bf16.gmra.mrb[0].mxu0 %v524
        %v643 = vpop.f32.mrb[0].mxu0
        %v644 = vadd.f32 0.0, %v643
        %v645 = vpop.f32.mrb[0].mxu0
        %v646 = vpop.f32.mrb[0].mxu0
        %v647 = vadd.f32 0.0, %v646
        %v648 = vpop.f32.mrb[0].mxu0
        %649 = vmatprep.mubr.bf16.mxu0 0
        %650 = vmatmul.mubr.bf16.gmra.mrb[0].mxu0 %v525
        %v651 = vpop.f32.mrb[0].mxu0
        %v652 = vadd.f32 0.0, %v651
        %v653 = vpop.f32.mrb[0].mxu0
        %v654 = vpop.f32.mrb[0].mxu0
        %v655 = vadd.f32 0.0, %v654
        %v656 = vpop.f32.mrb[0].mxu0
        %657 = vmatprep.mubr.bf16.mxu0 0
        %658 = vmatmul.mubr.bf16.gmra.mrb[0].mxu0 %v526
        %v659 = vpop.f32.mrb[0].mxu0
        %v660 = vadd.f32 0.0, %v659
        %v661 = vpop.f32.mrb[0].mxu0
        %v662 = vpop.f32.mrb[0].mxu0
        %v663 = vadd.f32 0.0, %v662
        %v664 = vpop.f32.mrb[0].mxu0
        %665 = vmatprep.mubr.bf16.mxu0 0
        %666 = vmatmul.mubr.bf16.gmra.mrb[0].mxu0 %v527
        %v667 = vpop.f32.mrb[0].mxu0
        %v668 = vadd.f32 0.0, %v667
        %v669 = vpop.f32.mrb[0].mxu0
        %v670 = vpop.f32.mrb[0].mxu0
        %v671 = vadd.f32 0.0, %v670
        %v672 = vpop.f32.mrb[0].mxu0
        %673 = vmatprep.mubr.bf16.mxu0 0
        %674 = vmatmul.mubr.bf16.gmra.mrb[0].mxu0 %v528
        %v675 = vpop.f32.mrb[0].mxu0
        %v676 = vadd.f32 0.0, %v675
        %v677 = vpop.f32.mrb[0].mxu0
        %v678 = vpop.f32.mrb[0].mxu0
        %v679 = vadd.f32 0.0, %v678
        %v680 = vpop.f32.mrb[0].mxu0
        %681 = vdwg.mxu0
        %v682 = vsel %vm384, 16843009, 0
        %v683 = vsel %vm385, 16843009, 0
        %v684 = vsel %vm386, 16843009, 0
        %v685 = vsel %vm387, 16843009, 0
        %v686 = vunpack.c.0.s8 %v682
        %v687 = vunpack.c.1.s8 %v682
        %v688 = vunpack.c.2.s8 %v682
        %v689 = vunpack.c.3.s8 %v682
        %v690 = vunpack.c.0.s8 %v683
        %v691 = vunpack.c.1.s8 %v683
        %v692 = vunpack.c.2.s8 %v683
        %v693 = vunpack.c.3.s8 %v683
        %v694 = vunpack.c.0.s8 %v684
        %v695 = vunpack.c.1.s8 %v684
        %v696 = vunpack.c.2.s8 %v684
        %v697 = vunpack.c.3.s8 %v684
        %v698 = vunpack.c.0.s8 %v685
        %v699 = vunpack.c.1.s8 %v685
        %v700 = vunpack.c.2.s8 %v685
        %v701 = vunpack.c.3.s8 %v685
        %v702 = vpack.c.b16 %v686, %v686
        %v703 = vpack.c.b8 %v702, %v702
        %v704 = vpack.c.b16 %v687, %v687
        %v705 = vpack.c.b8 %v704, %v704
        %v706 = vpack.c.b16 %v688, %v688
        %v707 = vpack.c.b8 %v706, %v706
        %v708 = vpack.c.b16 %v689, %v689
        %v709 = vpack.c.b8 %v708, %v708
        %v710 = vpack.c.b16 %v690, %v690
        %v711 = vpack.c.b8 %v710, %v710
        %v712 = vpack.c.b16 %v691, %v691
        %v713 = vpack.c.b8 %v712, %v712
        %v714 = vpack.c.b16 %v692, %v692
        %v715 = vpack.c.b8 %v714, %v714
        %v716 = vpack.c.b16 %v693, %v693
        %v717 = vpack.c.b8 %v716, %v716
        %v718 = vpack.c.b16 %v694, %v694
        %v719 = vpack.c.b8 %v718, %v718
        %v720 = vpack.c.b16 %v695, %v695
        %v721 = vpack.c.b8 %v720, %v720
        %v722 = vpack.c.b16 %v696, %v696
        %v723 = vpack.c.b8 %v722, %v722
        %v724 = vpack.c.b16 %v697, %v697
        %v725 = vpack.c.b8 %v724, %v724
        %v726 = vpack.c.b16 %v698, %v698
        %v727 = vpack.c.b8 %v726, %v726
        %v728 = vpack.c.b16 %v699, %v699
        %v729 = vpack.c.b8 %v728, %v728
        %v730 = vpack.c.b16 %v700, %v700
        %v731 = vpack.c.b8 %v730, %v730
        %v732 = vpack.c.b16 %v701, %v701
        %v733 = vpack.c.b8 %v732, %v732
        %vm734 = vnez %v703
        %vm735 = vnez %v705
        %vm736 = vnez %v707
        %vm737 = vnez %v709
        %vm738 = vnez %v711
        %vm739 = vnez %v713
        %vm740 = vnez %v715
        %vm741 = vnez %v717
        %vm742 = vnez %v719
        %vm743 = vnez %v721
        %vm744 = vnez %v723
        %vm745 = vnez %v725
        %vm746 = vnez %v727
        %vm747 = vnez %v729
        %vm748 = vnez %v731
        %vm749 = vnez %v733
        %v750 = vsel %vm734, 16843009, 0
        %v751 = vsel %vm735, 16843009, 0
        %v752 = vsel %vm736, 16843009, 0
        %v753 = vsel %vm737, 16843009, 0
        %v754 = vsel %vm738, 16843009, 0
        %v755 = vsel %vm739, 16843009, 0
        %v756 = vsel %vm740, 16843009, 0
        %v757 = vsel %vm741, 16843009, 0
        %v758 = vsel %vm742, 16843009, 0
        %v759 = vsel %vm743, 16843009, 0
        %v760 = vsel %vm744, 16843009, 0
        %v761 = vsel %vm745, 16843009, 0
        %v762 = vsel %vm746, 16843009, 0
        %v763 = vsel %vm747, 16843009, 0
        %v764 = vsel %vm748, 16843009, 0
        %v765 = vsel %vm749, 16843009, 0
        %v766 = vunpack.c.0.s8 %v750
        %v767 = vunpack.c.0.s8 %v751
        %v768 = vunpack.c.0.s8 %v752
        %v769 = vunpack.c.0.s8 %v753
        %v770 = vunpack.c.0.s8 %v754
        %v771 = vunpack.c.0.s8 %v755
        %v772 = vunpack.c.0.s8 %v756
        %v773 = vunpack.c.0.s8 %v757
        %v774 = vunpack.c.0.s8 %v758
        %v775 = vunpack.c.0.s8 %v759
        %v776 = vunpack.c.0.s8 %v760
        %v777 = vunpack.c.0.s8 %v761
        %v778 = vunpack.c.0.s8 %v762
        %v779 = vunpack.c.0.s8 %v763
        %v780 = vunpack.c.0.s8 %v764
        %v781 = vunpack.c.0.s8 %v765
        %vm782 = vcmp.ne.s32.totalorder %v766, 0
        %vm783 = vcmp.ne.s32.totalorder %v767, 0
        %vm784 = vcmp.ne.s32.totalorder %v768, 0
        %vm785 = vcmp.ne.s32.totalorder %v769, 0
        %vm786 = vcmp.ne.s32.totalorder %v770, 0
        %vm787 = vcmp.ne.s32.totalorder %v771, 0
        %vm788 = vcmp.ne.s32.totalorder %v772, 0
        %vm789 = vcmp.ne.s32.totalorder %v773, 0
        %vm790 = vcmp.ne.s32.totalorder %v774, 0
        %vm791 = vcmp.ne.s32.totalorder %v775, 0
        %vm792 = vcmp.ne.s32.totalorder %v776, 0
        %vm793 = vcmp.ne.s32.totalorder %v777, 0
        %vm794 = vcmp.ne.s32.totalorder %v778, 0
        %vm795 = vcmp.ne.s32.totalorder %v779, 0
        %vm796 = vcmp.ne.s32.totalorder %v780, 0
        %vm797 = vcmp.ne.s32.totalorder %v781, 0
        %v798 = vsel %vm782, -1e+09, %v620
        %v799 = vsel %vm783, -1e+09, %v623
        %v800 = vsel %vm784, -1e+09, %v628
        %v801 = vsel %vm785, -1e+09, %v631
        %v802 = vsel %vm786, -1e+09, %v636
        %v803 = vsel %vm787, -1e+09, %v639
        %v804 = vsel %vm788, -1e+09, %v644
        %v805 = vsel %vm789, -1e+09, %v647
        %v806 = vsel %vm790, -1e+09, %v652
        %v807 = vsel %vm791, -1e+09, %v655
        %v808 = vsel %vm792, -1e+09, %v660
        %v809 = vsel %vm793, -1e+09, %v663
        %v810 = vsel %vm794, -1e+09, %v668
        %v811 = vsel %vm795, -1e+09, %v671
        %v812 = vsel %vm796, -1e+09, %v676
        %v813 = vsel %vm797, -1e+09, %v679
        %v814 = vld [vmem:[#allocation2] sm:$0xff]
        %v815 = vld [vmem:[#allocation2 + $0x8] sm:$0xff]
        %v816 = vld [vmem:[#allocation2 + $0x10] sm:$0xff]
        %v817 = vld [vmem:[#allocation2 + $0x18] sm:$0xff]
        %v818 = vld [vmem:[#allocation2 + $0x20] sm:$0xff]
        %v819 = vld [vmem:[#allocation2 + $0x28] sm:$0xff]
        %v820 = vld [vmem:[#allocation2 + $0x30] sm:$0xff]
        %v821 = vld [vmem:[#allocation2 + $0x38] sm:$0xff]
        %v822 = vld [vmem:[#allocation2 + $0x40] sm:$0xff]
        %v823 = vld [vmem:[#allocation2 + $0x48] sm:$0xff]
        %v824 = vld [vmem:[#allocation2 + $0x50] sm:$0xff]
        %v825 = vld [vmem:[#allocation2 + $0x58] sm:$0xff]
        %v826 = vld [vmem:[#allocation2 + $0x60] sm:$0xff]
        %v827 = vld [vmem:[#allocation2 + $0x68] sm:$0xff]
        %v828 = vld [vmem:[#allocation2 + $0x70] sm:$0xff]
        %v829 = vld [vmem:[#allocation2 + $0x78] sm:$0xff]
        %830 = vmax.xlane.f32.xlu0 %v798
        %v831 = vpop.xlane.xlu0 %830
        %832 = vmax.xlane.f32.xlu0 %v799
        %v833 = vpop.xlane.xlu0 %832
        %834 = vmax.xlane.f32.xlu0 %v800
        %v835 = vpop.xlane.xlu0 %834
        %836 = vmax.xlane.f32.xlu0 %v801
        %v837 = vpop.xlane.xlu0 %836
        %838 = vmax.xlane.f32.xlu0 %v802
        %v839 = vpop.xlane.xlu0 %838
        %840 = vmax.xlane.f32.xlu0 %v803
        %v841 = vpop.xlane.xlu0 %840
        %842 = vmax.xlane.f32.xlu0 %v804
        %v843 = vpop.xlane.xlu0 %842
        %844 = vmax.xlane.f32.xlu0 %v805
        %v845 = vpop.xlane.xlu0 %844
        %846 = vmax.xlane.f32.xlu0 %v806
        %v847 = vpop.xlane.xlu0 %846
        %848 = vmax.xlane.f32.xlu0 %v807
        %v849 = vpop.xlane.xlu0 %848
        %850 = vmax.xlane.f32.xlu0 %v808
        %v851 = vpop.xlane.xlu0 %850
        %852 = vmax.xlane.f32.xlu0 %v809
        %v853 = vpop.xlane.xlu0 %852
        %854 = vmax.xlane.f32.xlu0 %v810
        %v855 = vpop.xlane.xlu0 %854
        %856 = vmax.xlane.f32.xlu0 %v811
        %v857 = vpop.xlane.xlu0 %856
        %858 = vmax.xlane.f32.xlu0 %v812
        %v859 = vpop.xlane.xlu0 %858
        %860 = vmax.xlane.f32.xlu0 %v813
        %v861 = vpop.xlane.xlu0 %860
        %v862 = vmax.f32 %v814, %v831
        %v863 = vmax.f32 %v815, %v833
        %v864 = vmax.f32 %v816, %v835
        %v865 = vmax.f32 %v817, %v837
        %v866 = vmax.f32 %v818, %v839
        %v867 = vmax.f32 %v819, %v841
        %v868 = vmax.f32 %v820, %v843
        %v869 = vmax.f32 %v821, %v845
        %v870 = vmax.f32 %v822, %v847
        %v871 = vmax.f32 %v823, %v849
        %v872 = vmax.f32 %v824, %v851
        %v873 = vmax.f32 %v825, %v853
        %v874 = vmax.f32 %v826, %v855
        %v875 = vmax.f32 %v827, %v857
        %v876 = vmax.f32 %v828, %v859
        %v877 = vmax.f32 %v829, %v861
        %v878 = vsub.f32 %v814, %v862
        %v879 = vsub.f32 %v815, %v863
        %v880 = vsub.f32 %v816, %v864
        %v881 = vsub.f32 %v817, %v865
        %v882 = vsub.f32 %v818, %v866
        %v883 = vsub.f32 %v819, %v867
        %v884 = vsub.f32 %v820, %v868
        %v885 = vsub.f32 %v821, %v869
        %v886 = vsub.f32 %v822, %v870
        %v887 = vsub.f32 %v823, %v871
        %v888 = vsub.f32 %v824, %v872
        %v889 = vsub.f32 %v825, %v873
        %v890 = vsub.f32 %v826, %v874
        %v891 = vsub.f32 %v827, %v875
        %v892 = vsub.f32 %v828, %v876
        %v893 = vsub.f32 %v829, %v877
        %v894 = vmul.f32 %v878, 1.442695
        %v895 = vpow.pop %v894
        %v896 = vmul.f32 %v879, 1.442695
        %v897 = vpow.pop %v896
        %v898 = vmul.f32 %v880, 1.442695
        %v899 = vpow.pop %v898
        %v900 = vmul.f32 %v881, 1.442695
        %v901 = vpow.pop %v900
        %v902 = vmul.f32 %v882, 1.442695
        %v903 = vpow.pop %v902
        %v904 = vmul.f32 %v883, 1.442695
        %v905 = vpow.pop %v904
        %v906 = vmul.f32 %v884, 1.442695
        %v907 = vpow.pop %v906
        %v908 = vmul.f32 %v885, 1.442695
        %v909 = vpow.pop %v908
        %v910 = vmul.f32 %v886, 1.442695
        %v911 = vpow.pop %v910
        %v912 = vmul.f32 %v887, 1.442695
        %v913 = vpow.pop %v912
        %v914 = vmul.f32 %v888, 1.442695
        %v915 = vpow.pop %v914
        %v916 = vmul.f32 %v889, 1.442695
        %v917 = vpow.pop %v916
        %v918 = vmul.f32 %v890, 1.442695
        %v919 = vpow.pop %v918
        %v920 = vmul.f32 %v891, 1.442695
        %v921 = vpow.pop %v920
        %v922 = vmul.f32 %v892, 1.442695
        %v923 = vpow.pop %v922
        %v924 = vmul.f32 %v893, 1.442695
        %v925 = vpow.pop %v924
        %927 = vset.pattern.permute.xlu0 0
        %928 = vperm.xlu0 %927, %v862
        %v929 = vpop.permute.xlu0 %928
        %932 = vset.pattern.permute.xlu0 0
        %933 = vperm.xlu0 %932, %v863
        %v934 = vpop.permute.xlu0 %933
        %937 = vset.pattern.permute.xlu0 0
        %938 = vperm.xlu0 %937, %v864
        %v939 = vpop.permute.xlu0 %938
        %942 = vset.pattern.permute.xlu0 0
        %943 = vperm.xlu0 %942, %v865
        %v944 = vpop.permute.xlu0 %943
        %947 = vset.pattern.permute.xlu0 0
        %948 = vperm.xlu0 %947, %v866
        %v949 = vpop.permute.xlu0 %948
        %952 = vset.pattern.permute.xlu0 0
        %953 = vperm.xlu0 %952, %v867
        %v954 = vpop.permute.xlu0 %953
        %957 = vset.pattern.permute.xlu0 0
        %958 = vperm.xlu0 %957, %v868
        %v959 = vpop.permute.xlu0 %958
        %962 = vset.pattern.permute.xlu0 0
        %963 = vperm.xlu0 %962, %v869
        %v964 = vpop.permute.xlu0 %963
        %967 = vset.pattern.permute.xlu0 0
        %968 = vperm.xlu0 %967, %v870
        %v969 = vpop.permute.xlu0 %968
        %972 = vset.pattern.permute.xlu0 0
        %973 = vperm.xlu0 %972, %v871
        %v974 = vpop.permute.xlu0 %973
        %977 = vset.pattern.permute.xlu0 0
        %978 = vperm.xlu0 %977, %v872
        %v979 = vpop.permute.xlu0 %978
        %982 = vset.pattern.permute.xlu0 0
        %983 = vperm.xlu0 %982, %v873
        %v984 = vpop.permute.xlu0 %983
        %987 = vset.pattern.permute.xlu0 0
        %988 = vperm.xlu0 %987, %v874
        %v989 = vpop.permute.xlu0 %988
        %992 = vset.pattern.permute.xlu0 0
        %993 = vperm.xlu0 %992, %v875
        %v994 = vpop.permute.xlu0 %993
        %997 = vset.pattern.permute.xlu0 0
        %998 = vperm.xlu0 %997, %v876
        %v999 = vpop.permute.xlu0 %998
        %1002 = vset.pattern.permute.xlu0 0
        %1003 = vperm.xlu0 %1002, %v877
        %v1004 = vpop.permute.xlu0 %1003
        %v1006 = vsub.f32 %v798, %v929
        %v1007 = vsub.f32 %v799, %v934
        %v1008 = vsub.f32 %v800, %v939
        %v1009 = vsub.f32 %v801, %v944
        %v1010 = vsub.f32 %v802, %v949
        %v1011 = vsub.f32 %v803, %v954
        %v1012 = vsub.f32 %v804, %v959
        %v1013 = vsub.f32 %v805, %v964
        %v1014 = vsub.f32 %v806, %v969
        %v1015 = vsub.f32 %v807, %v974
        %v1016 = vsub.f32 %v808, %v979
        %v1017 = vsub.f32 %v809, %v984
        %v1018 = vsub.f32 %v810, %v989
        %v1019 = vsub.f32 %v811, %v994
        %v1020 = vsub.f32 %v812, %v999
        %v1021 = vsub.f32 %v813, %v1004
        %v1022 = vpack.c.bf16 %v1007, %v1006
        %v1023 = vpack.c.bf16 %v1009, %v1008
        %v1024 = vpack.c.bf16 %v1011, %v1010
        %v1025 = vpack.c.bf16 %v1013, %v1012
        %v1026 = vpack.c.bf16 %v1015, %v1014
        %v1027 = vpack.c.bf16 %v1017, %v1016
        %v1028 = vpack.c.bf16 %v1019, %v1018
        %v1029 = vpack.c.bf16 %v1021, %v1020
        %v1031 = vmul.bf16 %v1022, 1069105081
        %v1032 = vpow.bf16.pop %v1031
        %v1034 = vmul.bf16 %v1023, 1069105081
        %v1035 = vpow.bf16.pop %v1034
        %v1037 = vmul.bf16 %v1024, 1069105081
        %v1038 = vpow.bf16.pop %v1037
        %v1040 = vmul.bf16 %v1025, 1069105081
        %v1041 = vpow.bf16.pop %v1040
        %v1043 = vmul.bf16 %v1026, 1069105081
        %v1044 = vpow.bf16.pop %v1043
        %v1046 = vmul.bf16 %v1027, 1069105081
        %v1047 = vpow.bf16.pop %v1046
        %v1049 = vmul.bf16 %v1028, 1069105081
        %v1050 = vpow.bf16.pop %v1049
        %v1052 = vmul.bf16 %v1029, 1069105081
        %v1053 = vpow.bf16.pop %v1052
        %v1054 = vunpack.c.l.bf16 %v1032
        %v1055 = vunpack.c.h.bf16 %v1032
        %v1056 = vunpack.c.l.bf16 %v1035
        %v1057 = vunpack.c.h.bf16 %v1035
        %v1058 = vunpack.c.l.bf16 %v1038
        %v1059 = vunpack.c.h.bf16 %v1038
        %v1060 = vunpack.c.l.bf16 %v1041
        %v1061 = vunpack.c.h.bf16 %v1041
        %v1062 = vunpack.c.l.bf16 %v1044
        %v1063 = vunpack.c.h.bf16 %v1044
        %v1064 = vunpack.c.l.bf16 %v1047
        %v1065 = vunpack.c.h.bf16 %v1047
        %v1066 = vunpack.c.l.bf16 %v1050
        %v1067 = vunpack.c.h.bf16 %v1050
        %v1068 = vunpack.c.l.bf16 %v1053
        %v1069 = vunpack.c.h.bf16 %v1053
        %1070 = vadd.xlane.f32.xlu0 %v1054
        %v1071 = vpop.xlane.xlu0 %1070
        %1072 = vadd.xlane.f32.xlu0 %v1055
        %v1073 = vpop.xlane.xlu0 %1072
        %1074 = vadd.xlane.f32.xlu0 %v1056
        %v1075 = vpop.xlane.xlu0 %1074
        %1076 = vadd.xlane.f32.xlu0 %v1057
        %v1077 = vpop.xlane.xlu0 %1076
        %1078 = vadd.xlane.f32.xlu0 %v1058
        %v1079 = vpop.xlane.xlu0 %1078
        %1080 = vadd.xlane.f32.xlu0 %v1059
        %v1081 = vpop.xlane.xlu0 %1080
        %1082 = vadd.xlane.f32.xlu0 %v1060
        %v1083 = vpop.xlane.xlu0 %1082
        %1084 = vadd.xlane.f32.xlu0 %v1061
        %v1085 = vpop.xlane.xlu0 %1084
        %1086 = vadd.xlane.f32.xlu0 %v1062
        %v1087 = vpop.xlane.xlu0 %1086
        %1088 = vadd.xlane.f32.xlu0 %v1063
        %v1089 = vpop.xlane.xlu0 %1088
        %1090 = vadd.xlane.f32.xlu0 %v1064
        %v1091 = vpop.xlane.xlu0 %1090
        %1092 = vadd.xlane.f32.xlu0 %v1065
        %v1093 = vpop.xlane.xlu0 %1092
        %1094 = vadd.xlane.f32.xlu0 %v1066
        %v1095 = vpop.xlane.xlu0 %1094
        %1096 = vadd.xlane.f32.xlu0 %v1067
        %v1097 = vpop.xlane.xlu0 %1096
        %1098 = vadd.xlane.f32.xlu0 %v1068
        %v1099 = vpop.xlane.xlu0 %1098
        %1100 = vadd.xlane.f32.xlu0 %v1069
        %v1101 = vpop.xlane.xlu0 %1100
        %v1102 = vld [vmem:[#allocation3] sm:$0xff]
        %v1103 = vld [vmem:[#allocation3 + $0x8] sm:$0xff]
        %v1104 = vld [vmem:[#allocation3 + $0x10] sm:$0xff]
        %v1105 = vld [vmem:[#allocation3 + $0x18] sm:$0xff]
        %v1106 = vld [vmem:[#allocation3 + $0x20] sm:$0xff]
        %v1107 = vld [vmem:[#allocation3 + $0x28] sm:$0xff]
        %v1108 = vld [vmem:[#allocation3 + $0x30] sm:$0xff]
        %v1109 = vld [vmem:[#allocation3 + $0x38] sm:$0xff]
        %v1110 = vld [vmem:[#allocation3 + $0x40] sm:$0xff]
        %v1111 = vld [vmem:[#allocation3 + $0x48] sm:$0xff]
        %v1112 = vld [vmem:[#allocation3 + $0x50] sm:$0xff]
        %v1113 = vld [vmem:[#allocation3 + $0x58] sm:$0xff]
        %v1114 = vld [vmem:[#allocation3 + $0x60] sm:$0xff]
        %v1115 = vld [vmem:[#allocation3 + $0x68] sm:$0xff]
        %v1116 = vld [vmem:[#allocation3 + $0x70] sm:$0xff]
        %v1117 = vld [vmem:[#allocation3 + $0x78] sm:$0xff]
        %v1118 = vmul.f32 %v895, %v1102
        %v1119 = vmul.f32 %v897, %v1103
        %v1120 = vmul.f32 %v899, %v1104
        %v1121 = vmul.f32 %v901, %v1105
        %v1122 = vmul.f32 %v903, %v1106
        %v1123 = vmul.f32 %v905, %v1107
        %v1124 = vmul.f32 %v907, %v1108
        %v1125 = vmul.f32 %v909, %v1109
        %v1126 = vmul.f32 %v911, %v1110
        %v1127 = vmul.f32 %v913, %v1111
        %v1128 = vmul.f32 %v915, %v1112
        %v1129 = vmul.f32 %v917, %v1113
        %v1130 = vmul.f32 %v919, %v1114
        %v1131 = vmul.f32 %v921, %v1115
        %v1132 = vmul.f32 %v923, %v1116
        %v1133 = vmul.f32 %v925, %v1117
        %v1134 = vadd.f32 %v1118, %v1071
        %v1135 = vadd.f32 %v1119, %v1073
        %v1136 = vadd.f32 %v1120, %v1075
        %v1137 = vadd.f32 %v1121, %v1077
        %v1138 = vadd.f32 %v1122, %v1079
        %v1139 = vadd.f32 %v1123, %v1081
        %v1140 = vadd.f32 %v1124, %v1083
        %v1141 = vadd.f32 %v1125, %v1085
        %v1142 = vadd.f32 %v1126, %v1087
        %v1143 = vadd.f32 %v1127, %v1089
        %v1144 = vadd.f32 %v1128, %v1091
        %v1145 = vadd.f32 %v1129, %v1093
        %v1146 = vadd.f32 %v1130, %v1095
        %v1147 = vadd.f32 %v1131, %v1097
        %v1148 = vadd.f32 %v1132, %v1099
        %v1149 = vadd.f32 %v1133, %v1101
        %vm1150 = vcmask 7168
        %1151 = vst.msk [vmem:[#allocation3] sm:$0xff] %vm1150, %v1134
        %1152 = vst.msk [vmem:[#allocation3 + $0x8] sm:$0xff] %vm1150, %v1135
        %1153 = vst.msk [vmem:[#allocation3 + $0x10] sm:$0xff] %vm1150, %v1136
        %1154 = vst.msk [vmem:[#allocation3 + $0x18] sm:$0xff] %vm1150, %v1137
        %1155 = vst.msk [vmem:[#allocation3 + $0x20] sm:$0xff] %vm1150, %v1138
        %1156 = vst.msk [vmem:[#allocation3 + $0x28] sm:$0xff] %vm1150, %v1139
        %1157 = vst.msk [vmem:[#allocation3 + $0x30] sm:$0xff] %vm1150, %v1140
        %1158 = vst.msk [vmem:[#allocation3 + $0x38] sm:$0xff] %vm1150, %v1141
        %1159 = vst.msk [vmem:[#allocation3 + $0x40] sm:$0xff] %vm1150, %v1142
        %1160 = vst.msk [vmem:[#allocation3 + $0x48] sm:$0xff] %vm1150, %v1143
        %1161 = vst.msk [vmem:[#allocation3 + $0x50] sm:$0xff] %vm1150, %v1144
        %1162 = vst.msk [vmem:[#allocation3 + $0x58] sm:$0xff] %vm1150, %v1145
        %1163 = vst.msk [vmem:[#allocation3 + $0x60] sm:$0xff] %vm1150, %v1146
        %1164 = vst.msk [vmem:[#allocation3 + $0x68] sm:$0xff] %vm1150, %v1147
        %1165 = vst.msk [vmem:[#allocation3 + $0x70] sm:$0xff] %vm1150, %v1148
        %1166 = vst.msk [vmem:[#allocation3 + $0x78] sm:$0xff] %vm1150, %v1149
        %v1167 = vld [vmem:[#allocation4] sm:$0xff]
        %v1168 = vld [vmem:[#allocation4 + $0x8] sm:$0xff]
        %v1169 = vld [vmem:[#allocation4 + $0x10] sm:$0xff]
        %v1170 = vld [vmem:[#allocation4 + $0x18] sm:$0xff]
        %v1171 = vld [vmem:[#allocation4 + $0x20] sm:$0xff]
        %v1172 = vld [vmem:[#allocation4 + $0x28] sm:$0xff]
        %v1173 = vld [vmem:[#allocation4 + $0x30] sm:$0xff]
        %v1174 = vld [vmem:[#allocation4 + $0x38] sm:$0xff]
        %v1175 = vld [vmem:[#allocation4 + $0x40] sm:$0xff]
        %v1176 = vld [vmem:[#allocation4 + $0x48] sm:$0xff]
        %v1177 = vld [vmem:[#allocation4 + $0x50] sm:$0xff]
        %v1178 = vld [vmem:[#allocation4 + $0x58] sm:$0xff]
        %v1179 = vld [vmem:[#allocation4 + $0x60] sm:$0xff]
        %v1180 = vld [vmem:[#allocation4 + $0x68] sm:$0xff]
        %v1181 = vld [vmem:[#allocation4 + $0x70] sm:$0xff]
        %v1182 = vld [vmem:[#allocation4 + $0x78] sm:$0xff]
        %1184 = vset.pattern.permute.xlu0 0
        %1185 = vperm.xlu0 %1184, %v895
        %v1186 = vpop.permute.xlu0 %1185
        %1189 = vset.pattern.permute.xlu0 0
        %1190 = vperm.xlu0 %1189, %v897
        %v1191 = vpop.permute.xlu0 %1190
        %1194 = vset.pattern.permute.xlu0 0
        %1195 = vperm.xlu0 %1194, %v899
        %v1196 = vpop.permute.xlu0 %1195
        %1199 = vset.pattern.permute.xlu0 0
        %1200 = vperm.xlu0 %1199, %v901
        %v1201 = vpop.permute.xlu0 %1200
        %1204 = vset.pattern.permute.xlu0 0
        %1205 = vperm.xlu0 %1204, %v903
        %v1206 = vpop.permute.xlu0 %1205
        %1209 = vset.pattern.permute.xlu0 0
        %1210 = vperm.xlu0 %1209, %v905
        %v1211 = vpop.permute.xlu0 %1210
        %1214 = vset.pattern.permute.xlu0 0
        %1215 = vperm.xlu0 %1214, %v907
        %v1216 = vpop.permute.xlu0 %1215
        %1219 = vset.pattern.permute.xlu0 0
        %1220 = vperm.xlu0 %1219, %v909
        %v1221 = vpop.permute.xlu0 %1220
        %1224 = vset.pattern.permute.xlu0 0
        %1225 = vperm.xlu0 %1224, %v911
        %v1226 = vpop.permute.xlu0 %1225
        %1229 = vset.pattern.permute.xlu0 0
        %1230 = vperm.xlu0 %1229, %v913
        %v1231 = vpop.permute.xlu0 %1230
        %1234 = vset.pattern.permute.xlu0 0
        %1235 = vperm.xlu0 %1234, %v915
        %v1236 = vpop.permute.xlu0 %1235
        %1239 = vset.pattern.permute.xlu0 0
        %1240 = vperm.xlu0 %1239, %v917
        %v1241 = vpop.permute.xlu0 %1240
        %1244 = vset.pattern.permute.xlu0 0
        %1245 = vperm.xlu0 %1244, %v919
        %v1246 = vpop.permute.xlu0 %1245
        %1249 = vset.pattern.permute.xlu0 0
        %1250 = vperm.xlu0 %1249, %v921
        %v1251 = vpop.permute.xlu0 %1250
        %1254 = vset.pattern.permute.xlu0 0
        %1255 = vperm.xlu0 %1254, %v923
        %v1256 = vpop.permute.xlu0 %1255
        %1259 = vset.pattern.permute.xlu0 0
        %1260 = vperm.xlu0 %1259, %v925
        %v1261 = vpop.permute.xlu0 %1260
        %v1263 = vmul.f32 %v1186, %v1167
        %v1264 = vmul.f32 %v1191, %v1168
        %v1265 = vmul.f32 %v1196, %v1169
        %v1266 = vmul.f32 %v1201, %v1170
        %v1267 = vmul.f32 %v1206, %v1171
        %v1268 = vmul.f32 %v1211, %v1172
        %v1269 = vmul.f32 %v1216, %v1173
        %v1270 = vmul.f32 %v1221, %v1174
        %v1271 = vmul.f32 %v1226, %v1175
        %v1272 = vmul.f32 %v1231, %v1176
        %v1273 = vmul.f32 %v1236, %v1177
        %v1274 = vmul.f32 %v1241, %v1178
        %v1275 = vmul.f32 %v1246, %v1179
        %v1276 = vmul.f32 %v1251, %v1180
        %v1277 = vmul.f32 %v1256, %v1181
        %v1278 = vmul.f32 %v1261, %v1182
        %v1295 = vunpack.c.l.b16 %v473
        %v1296 = vunpack.c.l.b16 %v474
        %v1297 = vunpack.c.l.b16 %v475
        %v1298 = vunpack.c.l.b16 %v476
        %v1299 = vunpack.c.l.b16 %v477
        %v1300 = vunpack.c.l.b16 %v478
        %v1301 = vunpack.c.l.b16 %v479
        %v1302 = vunpack.c.l.b16 %v480
        %v1303 = vunpack.c.l.b16 %v481
        %v1304 = vunpack.c.l.b16 %v482
        %v1305 = vunpack.c.l.b16 %v483
        %v1306 = vunpack.c.l.b16 %v484
        %v1307 = vunpack.c.l.b16 %v485
        %v1308 = vunpack.c.l.b16 %v486
        %v1309 = vunpack.c.l.b16 %v487
        %v1310 = vunpack.c.l.b16 %v488
        %v1311 = vpack.c.b16 %v1296, %v1295
        %v1312 = vpack.c.b16 %v1298, %v1297
        %v1313 = vpack.c.b16 %v1300, %v1299
        %v1314 = vpack.c.b16 %v1302, %v1301
        %v1315 = vpack.c.b16 %v1304, %v1303
        %v1316 = vpack.c.b16 %v1306, %v1305
        %v1317 = vpack.c.b16 %v1308, %v1307
        %v1318 = vpack.c.b16 %v1310, %v1309
        %1327 = vmatprep.subr.bf16.mxu0 0
        %1328 = vmatpush1.bf16.msra.mxu0 %v1311
        %1329 = vmatprep.subr.bf16.mxu0 0
        %1330 = vmatpush1.bf16.msra.mxu0 %v1312
        %1331 = vmatprep.subr.bf16.mxu0 0
        %1332 = vmatpush1.bf16.msra.mxu0 %v1313
        %1333 = vmatprep.subr.bf16.mxu0 0
        %1334 = vmatpush1.bf16.msra.mxu0 %v1314
        %1335 = vmatprep.subr.bf16.mxu0 0
        %1336 = vmatpush1.bf16.msra.mxu0 %v1315
        %1337 = vmatprep.subr.bf16.mxu0 0
        %1338 = vmatpush1.bf16.msra.mxu0 %v1316
        %1339 = vmatprep.subr.bf16.mxu0 0
        %1340 = vmatpush1.bf16.msra.mxu0 %v1317
        %1341 = vmatprep.subr.bf16.mxu0 0
        %1342 = vmatpush1.bf16.msra.mxu0 %v1318
        %1343 = vmatprep.subr.bf16.mxu0 0
        %1344 = vmatpush1.bf16.msra.mxu0 0
        %1345 = vmatprep.subr.bf16.mxu0 0
        %1346 = vmatpush1.bf16.msra.mxu0 0
        %1347 = vmatprep.subr.bf16.mxu0 0
        %1348 = vmatpush1.bf16.msra.mxu0 0
        %1349 = vmatprep.subr.bf16.mxu0 0
        %1350 = vmatpush1.bf16.msra.mxu0 0
        %1351 = vmatprep.subr.bf16.mxu0 0
        %1352 = vmatpush1.bf16.msra.mxu0 0
        %1353 = vmatprep.subr.bf16.mxu0 0
        %1354 = vmatpush1.bf16.msra.mxu0 0
        %1355 = vmatprep.subr.bf16.mxu0 0
        %1356 = vmatpush1.bf16.msra.mxu0 0
        %1357 = vmatprep.subr.bf16.mxu0 0
        %1358 = vmatpush1.bf16.msra.mxu0 0
        %1359 = vmatprep.mubr.bf16.mxu0 0
        %1360 = vmatmul.mubr.bf16.gmra.mrb[0].mxu0 %v1032
        %v1361 = vpop.f32.mrb[0].mxu0
        %v1362 = vadd.f32 0.0, %v1361
        %v1363 = vpop.f32.mrb[0].mxu0
        %v1364 = vpop.f32.mrb[0].mxu0
        %v1365 = vadd.f32 0.0, %v1364
        %v1366 = vpop.f32.mrb[0].mxu0
        %1367 = vmatprep.mubr.bf16.mxu0 0
        %1368 = vmatmul.mubr.bf16.gmra.mrb[0].mxu0 %v1035
        %v1369 = vpop.f32.mrb[0].mxu0
        %v1370 = vadd.f32 0.0, %v1369
        %v1371 = vpop.f32.mrb[0].mxu0
        %v1372 = vpop.f32.mrb[0].mxu0
        %v1373 = vadd.f32 0.0, %v1372
        %v1374 = vpop.f32.mrb[0].mxu0
        %1375 = vmatprep.mubr.bf16.mxu0 0
        %1376 = vmatmul.mubr.bf16.gmra.mrb[0].mxu0 %v1038
        %v1377 = vpop.f32.mrb[0].mxu0
        %v1378 = vadd.f32 0.0, %v1377
        %v1379 = vpop.f32.mrb[0].mxu0
        %v1380 = vpop.f32.mrb[0].mxu0
        %v1381 = vadd.f32 0.0, %v1380
        %v1382 = vpop.f32.mrb[0].mxu0
        %1383 = vmatprep.mubr.bf16.mxu0 0
        %1384 = vmatmul.mubr.bf16.gmra.mrb[0].mxu0 %v1041
        %v1385 = vpop.f32.mrb[0].mxu0
        %v1386 = vadd.f32 0.0, %v1385
        %v1387 = vpop.f32.mrb[0].mxu0
        %v1388 = vpop.f32.mrb[0].mxu0
        %v1389 = vadd.f32 0.0, %v1388
        %v1390 = vpop.f32.mrb[0].mxu0
        %1391 = vmatprep.mubr.bf16.mxu0 0
        %1392 = vmatmul.mubr.bf16.gmra.mrb[0].mxu0 %v1044
        %v1393 = vpop.f32.mrb[0].mxu0
        %v1394 = vadd.f32 0.0, %v1393
        %v1395 = vpop.f32.mrb[0].mxu0
        %v1396 = vpop.f32.mrb[0].mxu0
        %v1397 = vadd.f32 0.0, %v1396
        %v1398 = vpop.f32.mrb[0].mxu0
        %1399 = vmatprep.mubr.bf16.mxu0 0
        %1400 = vmatmul.mubr.bf16.gmra.mrb[0].mxu0 %v1047
        %v1401 = vpop.f32.mrb[0].mxu0
        %v1402 = vadd.f32 0.0, %v1401
        %v1403 = vpop.f32.mrb[0].mxu0
        %v1404 = vpop.f32.mrb[0].mxu0
        %v1405 = vadd.f32 0.0, %v1404
        %v1406 = vpop.f32.mrb[0].mxu0
        %1407 = vmatprep.mubr.bf16.mxu0 0
        %1408 = vmatmul.mubr.bf16.gmra.mrb[0].mxu0 %v1050
        %v1409 = vpop.f32.mrb[0].mxu0
        %v1410 = vadd.f32 0.0, %v1409
        %v1411 = vpop.f32.mrb[0].mxu0
        %v1412 = vpop.f32.mrb[0].mxu0
        %v1413 = vadd.f32 0.0, %v1412
        %v1414 = vpop.f32.mrb[0].mxu0
        %1415 = vmatprep.mubr.bf16.mxu0 0
        %1416 = vmatmul.mubr.bf16.gmra.mrb[0].mxu0 %v1053
        %v1417 = vpop.f32.mrb[0].mxu0
        %v1418 = vadd.f32 0.0, %v1417
        %v1419 = vpop.f32.mrb[0].mxu0
        %v1420 = vpop.f32.mrb[0].mxu0
        %v1421 = vadd.f32 0.0, %v1420
        %v1422 = vpop.f32.mrb[0].mxu0
        %1423 = vdwg.mxu0
        %v1424 = vadd.f32 %v1263, %v1362
        %v1425 = vadd.f32 %v1264, %v1365
        %v1426 = vadd.f32 %v1265, %v1370
        %v1427 = vadd.f32 %v1266, %v1373
        %v1428 = vadd.f32 %v1267, %v1378
        %v1429 = vadd.f32 %v1268, %v1381
        %v1430 = vadd.f32 %v1269, %v1386
        %v1431 = vadd.f32 %v1270, %v1389
        %v1432 = vadd.f32 %v1271, %v1394
        %v1433 = vadd.f32 %v1272, %v1397
        %v1434 = vadd.f32 %v1273, %v1402
        %v1435 = vadd.f32 %v1274, %v1405
        %v1436 = vadd.f32 %v1275, %v1410
        %v1437 = vadd.f32 %v1276, %v1413
        %v1438 = vadd.f32 %v1277, %v1418
        %v1439 = vadd.f32 %v1278, %v1421
        %1440 = vst [vmem:[#allocation4] sm:$0xff] %v1424
        %1441 = vst [vmem:[#allocation4 + $0x8] sm:$0xff] %v1425
        %1442 = vst [vmem:[#allocation4 + $0x10] sm:$0xff] %v1426
        %1443 = vst [vmem:[#allocation4 + $0x18] sm:$0xff] %v1427
        %1444 = vst [vmem:[#allocation4 + $0x20] sm:$0xff] %v1428
        %1445 = vst [vmem:[#allocation4 + $0x28] sm:$0xff] %v1429
        %1446 = vst [vmem:[#allocation4 + $0x30] sm:$0xff] %v1430
        %1447 = vst [vmem:[#allocation4 + $0x38] sm:$0xff] %v1431
        %1448 = vst [vmem:[#allocation4 + $0x40] sm:$0xff] %v1432
        %1449 = vst [vmem:[#allocation4 + $0x48] sm:$0xff] %v1433
        %1450 = vst [vmem:[#allocation4 + $0x50] sm:$0xff] %v1434
        %1451 = vst [vmem:[#allocation4 + $0x58] sm:$0xff] %v1435
        %1452 = vst [vmem:[#allocation4 + $0x60] sm:$0xff] %v1436
        %1453 = vst [vmem:[#allocation4 + $0x68] sm:$0xff] %v1437
        %1454 = vst [vmem:[#allocation4 + $0x70] sm:$0xff] %v1438
        %1455 = vst [vmem:[#allocation4 + $0x78] sm:$0xff] %v1439
        %1456 = vst.msk [vmem:[#allocation2] sm:$0xff] %vm1150, %v862
        %1457 = vst.msk [vmem:[#allocation2 + $0x8] sm:$0xff] %vm1150, %v863
        %1458 = vst.msk [vmem:[#allocation2 + $0x10] sm:$0xff] %vm1150, %v864
        %1459 = vst.msk [vmem:[#allocation2 + $0x18] sm:$0xff] %vm1150, %v865
        %1460 = vst.msk [vmem:[#allocation2 + $0x20] sm:$0xff] %vm1150, %v866
        %1461 = vst.msk [vmem:[#allocation2 + $0x28] sm:$0xff] %vm1150, %v867
        %1462 = vst.msk [vmem:[#allocation2 + $0x30] sm:$0xff] %vm1150, %v868
        %1463 = vst.msk [vmem:[#allocation2 + $0x38] sm:$0xff] %vm1150, %v869
        %1464 = vst.msk [vmem:[#allocation2 + $0x40] sm:$0xff] %vm1150, %v870
        %1465 = vst.msk [vmem:[#allocation2 + $0x48] sm:$0xff] %vm1150, %v871
        %1466 = vst.msk [vmem:[#allocation2 + $0x50] sm:$0xff] %vm1150, %v872
        %1467 = vst.msk [vmem:[#allocation2 + $0x58] sm:$0xff] %vm1150, %v873
        %1468 = vst.msk [vmem:[#allocation2 + $0x60] sm:$0xff] %vm1150, %v874
        %1469 = vst.msk [vmem:[#allocation2 + $0x68] sm:$0xff] %vm1150, %v875
        %1470 = vst.msk [vmem:[#allocation2 + $0x70] sm:$0xff] %vm1150, %v876
        %1471 = vst.msk [vmem:[#allocation2 + $0x78] sm:$0xff] %vm1150, %v877
        %p1472 = scmp.eq.s32.totalorder %s34, 1
        // Predicated region
        $region57: #{tpu_custom_call.1} parent=35 // pred_check
          %p1473 = pneg %p1472
        $region58: #{tpu_custom_call.1} parent=35 // pred_check_branch
          %1475 = sbr.rel (%p1473) target = $region60
        $region59: #{tpu_custom_call.1} parent=35 // pred_region
          %v1476 = vld [vmem:[#allocation4] sm:$0xff]
          %v1477 = vld [vmem:[#allocation4 + $0x8] sm:$0xff]
          %v1478 = vld [vmem:[#allocation4 + $0x10] sm:$0xff]
          %v1479 = vld [vmem:[#allocation4 + $0x18] sm:$0xff]
          %v1480 = vld [vmem:[#allocation4 + $0x20] sm:$0xff]
          %v1481 = vld [vmem:[#allocation4 + $0x28] sm:$0xff]
          %v1482 = vld [vmem:[#allocation4 + $0x30] sm:$0xff]
          %v1483 = vld [vmem:[#allocation4 + $0x38] sm:$0xff]
          %v1484 = vld [vmem:[#allocation4 + $0x40] sm:$0xff]
          %v1485 = vld [vmem:[#allocation4 + $0x48] sm:$0xff]
          %v1486 = vld [vmem:[#allocation4 + $0x50] sm:$0xff]
          %v1487 = vld [vmem:[#allocation4 + $0x58] sm:$0xff]
          %v1488 = vld [vmem:[#allocation4 + $0x60] sm:$0xff]
          %v1489 = vld [vmem:[#allocation4 + $0x68] sm:$0xff]
          %v1490 = vld [vmem:[#allocation4 + $0x70] sm:$0xff]
          %v1491 = vld [vmem:[#allocation4 + $0x78] sm:$0xff]
          %v1492 = vld [vmem:[#allocation3] sm:$0xff]
          %v1493 = vld [vmem:[#allocation3 + $0x8] sm:$0xff]
          %v1494 = vld [vmem:[#allocation3 + $0x10] sm:$0xff]
          %v1495 = vld [vmem:[#allocation3 + $0x18] sm:$0xff]
          %v1496 = vld [vmem:[#allocation3 + $0x20] sm:$0xff]
          %v1497 = vld [vmem:[#allocation3 + $0x28] sm:$0xff]
          %v1498 = vld [vmem:[#allocation3 + $0x30] sm:$0xff]
          %v1499 = vld [vmem:[#allocation3 + $0x38] sm:$0xff]
          %v1500 = vld [vmem:[#allocation3 + $0x40] sm:$0xff]
          %v1501 = vld [vmem:[#allocation3 + $0x48] sm:$0xff]
          %v1502 = vld [vmem:[#allocation3 + $0x50] sm:$0xff]
          %v1503 = vld [vmem:[#allocation3 + $0x58] sm:$0xff]
          %v1504 = vld [vmem:[#allocation3 + $0x60] sm:$0xff]
          %v1505 = vld [vmem:[#allocation3 + $0x68] sm:$0xff]
          %v1506 = vld [vmem:[#allocation3 + $0x70] sm:$0xff]
          %v1507 = vld [vmem:[#allocation3 + $0x78] sm:$0xff]
          %1509 = vset.pattern.permute.xlu0 0
          %1510 = vperm.xlu0 %1509, %v1492
          %v1511 = vpop.permute.xlu0 %1510
          %1514 = vset.pattern.permute.xlu0 0
          %1515 = vperm.xlu0 %1514, %v1493
          %v1516 = vpop.permute.xlu0 %1515
          %1519 = vset.pattern.permute.xlu0 0
          %1520 = vperm.xlu0 %1519, %v1494
          %v1521 = vpop.permute.xlu0 %1520
          %1524 = vset.pattern.permute.xlu0 0
          %1525 = vperm.xlu0 %1524, %v1495
          %v1526 = vpop.permute.xlu0 %1525
          %1529 = vset.pattern.permute.xlu0 0
          %1530 = vperm.xlu0 %1529, %v1496
          %v1531 = vpop.permute.xlu0 %1530
          %1534 = vset.pattern.permute.xlu0 0
          %1535 = vperm.xlu0 %1534, %v1497
          %v1536 = vpop.permute.xlu0 %1535
          %1539 = vset.pattern.permute.xlu0 0
          %1540 = vperm.xlu0 %1539, %v1498
          %v1541 = vpop.permute.xlu0 %1540
          %1544 = vset.pattern.permute.xlu0 0
          %1545 = vperm.xlu0 %1544, %v1499
          %v1546 = vpop.permute.xlu0 %1545
          %1549 = vset.pattern.permute.xlu0 0
          %1550 = vperm.xlu0 %1549, %v1500
          %v1551 = vpop.permute.xlu0 %1550
          %1554 = vset.pattern.permute.xlu0 0
          %1555 = vperm.xlu0 %1554, %v1501
          %v1556 = vpop.permute.xlu0 %1555
          %1559 = vset.pattern.permute.xlu0 0
          %1560 = vperm.xlu0 %1559, %v1502
          %v1561 = vpop.permute.xlu0 %1560
          %1564 = vset.pattern.permute.xlu0 0
          %1565 = vperm.xlu0 %1564, %v1503
          %v1566 = vpop.permute.xlu0 %1565
          %1569 = vset.pattern.permute.xlu0 0
          %1570 = vperm.xlu0 %1569, %v1504
          %v1571 = vpop.permute.xlu0 %1570
          %1574 = vset.pattern.permute.xlu0 0
          %1575 = vperm.xlu0 %1574, %v1505
          %v1576 = vpop.permute.xlu0 %1575
          %1579 = vset.pattern.permute.xlu0 0
          %1580 = vperm.xlu0 %1579, %v1506
          %v1581 = vpop.permute.xlu0 %1580
          %1584 = vset.pattern.permute.xlu0 0
          %1585 = vperm.xlu0 %1584, %v1507
          %v1586 = vpop.permute.xlu0 %1585
          %v1588 = vrcp.pop %v1511
          %v1589 = vmul.f32 %v1476, %v1588
          %v1590 = vrcp.pop %v1516
          %v1591 = vmul.f32 %v1477, %v1590
          %v1592 = vrcp.pop %v1521
          %v1593 = vmul.f32 %v1478, %v1592
          %v1594 = vrcp.pop %v1526
          %v1595 = vmul.f32 %v1479, %v1594
          %v1596 = vrcp.pop %v1531
          %v1597 = vmul.f32 %v1480, %v1596
          %v1598 = vrcp.pop %v1536
          %v1599 = vmul.f32 %v1481, %v1598
          %v1600 = vrcp.pop %v1541
          %v1601 = vmul.f32 %v1482, %v1600
          %v1602 = vrcp.pop %v1546
          %v1603 = vmul.f32 %v1483, %v1602
          %v1604 = vrcp.pop %v1551
          %v1605 = vmul.f32 %v1484, %v1604
          %v1606 = vrcp.pop %v1556
          %v1607 = vmul.f32 %v1485, %v1606
          %v1608 = vrcp.pop %v1561
          %v1609 = vmul.f32 %v1486, %v1608
          %v1610 = vrcp.pop %v1566
          %v1611 = vmul.f32 %v1487, %v1610
          %v1612 = vrcp.pop %v1571
          %v1613 = vmul.f32 %v1488, %v1612
          %v1614 = vrcp.pop %v1576
          %v1615 = vmul.f32 %v1489, %v1614
          %v1616 = vrcp.pop %v1581
          %v1617 = vmul.f32 %v1490, %v1616
          %v1618 = vrcp.pop %v1586
          %v1619 = vmul.f32 %v1491, %v1618
          %1620 = vst [vmem:[%s372] sm:$0xff] %v1589
          %1621 = vst [vmem:[%s372 + $0x8] sm:$0xff] %v1591
          %1622 = vst [vmem:[%s372 + $0x10] sm:$0xff] %v1593
          %1623 = vst [vmem:[%s372 + $0x18] sm:$0xff] %v1595
          %1624 = vst [vmem:[%s372 + $0x20] sm:$0xff] %v1597
          %1625 = vst [vmem:[%s372 + $0x28] sm:$0xff] %v1599
          %1626 = vst [vmem:[%s372 + $0x30] sm:$0xff] %v1601
          %1627 = vst [vmem:[%s372 + $0x38] sm:$0xff] %v1603
          %1628 = vst [vmem:[%s372 + $0x40] sm:$0xff] %v1605
          %1629 = vst [vmem:[%s372 + $0x48] sm:$0xff] %v1607
          %1630 = vst [vmem:[%s372 + $0x50] sm:$0xff] %v1609
          %1631 = vst [vmem:[%s372 + $0x58] sm:$0xff] %v1611
          %1632 = vst [vmem:[%s372 + $0x60] sm:$0xff] %v1613
          %1633 = vst [vmem:[%s372 + $0x68] sm:$0xff] %v1615
          %1634 = vst [vmem:[%s372 + $0x70] sm:$0xff] %v1617
          %1635 = vst [vmem:[%s372 + $0x78] sm:$0xff] %v1619
        $region60: #{tpu_custom_call.1} parent=35 // pred_fallthru
          _
        %s1636 = sand.u32 %s170, 1
        %s1637 = scalar_lea.sflag [#allocation7], %s1636
        %s1638 = sand.u32 %s170, 1
        %s1639 = smul.addr %s1638, 128
        %s1640 = scalar_lea.vmem [#allocation13], %s1639
        // Predicated region
        $region61: #{tpu_custom_call.1} parent=35 // pred_check
          %p1641 = pneg %p180
        $region62: #{tpu_custom_call.1} parent=35 // pred_check_branch
          %1643 = sbr.rel (%p1641) target = $region64
        $region63: #{tpu_custom_call.1} parent=35 // pred_region
          %s1644 = smul.u32 16, %s33
          %s1646 = ssub.s32 2048, 2048
          %1647 = vsyncadd %s1637, %s1646
          %s1648 = smul.addr %s32, 32
          %s1649 = sadd.s32 %s1644, %s1648
          %s1650 = smul.addr %s1649, 128
          %s1651 = scalar_lea.hbm %s4, %s1650
          %s1652 = sshll.u32 %s1640, 4
          %s1653 = int_to_ptr.vmem [resolvable:$true] %s1652
          %1658 = dma.vmem_to_hbm [thread:$0]  %s1653, 2048, %s1651, %s1637, 128, 128, 8
        $region64: #{tpu_custom_call.1} parent=35 // pred_fallthru
          _
      $region36: #{tpu_custom_call.1} parent=5 // pred_fallthru
        _
      %p1659 = scmp.le.s32.totalorder 2, %s22
      // Predicated region
      $region65: #{tpu_custom_call.1} parent=5 // pred_check
        %p1660 = pneg %p1659
      $region66: #{tpu_custom_call.1} parent=5 // pred_check_branch
        %1662 = sbr.rel (%p1660) target = $region68
      $region67: #{tpu_custom_call.1} parent=5 // pred_region
        %s1663 = ssub.s32 %s22, 2
        // Predicated region
        $region69: #{tpu_custom_call.1} parent=67 // pred_check
          %p1664 = pneg %p186
        $region70: #{tpu_custom_call.1} parent=67 // pred_check_branch
          %1666 = sbr.rel (%p1664) target = $region72
        $region71: #{tpu_custom_call.1} parent=67 // pred_region
          %s1667 = sand.u32 %s171, 1
          %s1668 = scalar_lea.sflag [#allocation7], %s1667
          %s1669 = sand.u32 %s171, 1
          %s1670 = smul.addr %s1669, 128
          %s1671 = scalar_lea.vmem [#allocation13], %s1670
          %1672 = dma.done %s1668, 2048
        $region72: #{tpu_custom_call.1} parent=67 // pred_fallthru
          _
      $region68: #{tpu_custom_call.1} parent=5 // pred_fallthru
        _
    $region6: #{tpu_custom_call.1} parent=1 // loop_footer
      %s26 = sadd.s32 1, %s22
    $region7: #{tpu_custom_call.1} parent=1 // loop_footer_branch
      %21 = sbr.rel target = $region3
    $region8: #{tpu_custom_call.1} parent=1 // loop_exit
      _
    %1673 = vsyncpa [#allocation6], 1
    %s1674 = scalar_lea.sflag [#allocation6], 1
    %1675 = vsyncpa %s1674, 1
    %1676 = vsyncpa [#allocation9], 1
    %s1677 = scalar_lea.sflag [#allocation9], 1
    %1678 = vsyncpa %s1677, 1
    %1679 = vsyncpa [#allocation12], 1
    %s1680 = scalar_lea.sflag [#allocation12], 1
    %1681 = vsyncpa %s1680, 1
    %1682 = vsyncpa [#allocation7], 1
    %s1683 = scalar_lea.sflag [#allocation7], 1
    %1684 = vsyncpa %s1683, 1

</llo_original>
